<compile_context>
chip_gen: v5e
topology: v5e:2x2
jax: 0.10.0
libtpu: 0.0.40
codegen_flags: <defaults>
</compile_context>

<pallas_src>
import jax
import jax.numpy as jnp
from jax.experimental import pallas as pl
from jax.experimental.pallas import tpu as pltpu


def _softplus(x):
    # numerically stable softplus, matches torch.nn.Softplus (beta=1); f32 math
    return jnp.maximum(x, 0.0) + jnp.log1p(jnp.exp(-jnp.abs(x)))


def _mlp_kernel(bond_ref, atom_ref, glob_ref,
                w1b_ref, w1a_ref, w1g_ref, b1_ref,
                w2_ref, b2_ref, w3_ref, b3_ref, o_ref):
    # Layer 1: concat([bond, atoms, glob]) @ W1  ==  bond@W1b + atoms@W1a + glob@W1g
    h = jnp.dot(bond_ref[...], w1b_ref[...], preferred_element_type=jnp.float32)
    h = h + jnp.dot(atom_ref[...], w1a_ref[...], preferred_element_type=jnp.float32)
    h = h + jnp.dot(glob_ref[...], w1g_ref[...], preferred_element_type=jnp.float32)
    h = _softplus(h + b1_ref[...])                       # f32
    # Layer 2
    h = jnp.dot(h.astype(w2_ref.dtype), w2_ref[...],
                preferred_element_type=jnp.float32) + b2_ref[...]
    h = _softplus(h)                                     # f32
    # Layer 3 (Identity activation)
    o = jnp.dot(h.astype(w3_ref.dtype), w3_ref[...],
                preferred_element_type=jnp.float32) + b3_ref[...]
    o_ref[...] = o.astype(o_ref.dtype)


def bond_mlp_pallas(bond, atoms, glob, w1, b1, w2, b2, w3, b3, *,
                    tile_n=1024, compute_dtype=jnp.bfloat16):
    """Fused 3-layer MLP over per-bond features, tiled over bond rows.

    bond:  (Nb, Db)     atoms: (Nb, 2*Da)     glob: (Nb, Dg)
    w1:    (Db+2Da+Dg, H1), b1: (1, H1), w2: (H1, H2), ... ; output is f32.
    """
    nb, db = bond.shape
    da2 = atoms.shape[1]
    dg = glob.shape[1]
    h1, h2, h3 = w1.shape[1], w2.shape[1], w3.shape[1]
    assert w1.shape[0] == db + da2 + dg

    # Split W1 into row blocks matching the (virtual) concat layout.
    w1b, w1a, w1g = w1[:db], w1[db:db + da2], w1[db + da2:]

    # Large row tile (amortizes ~0.35us/step pipeline overhead); multiple of 8,
    # clamped to the 8-rounded number of bonds. Ragged tail handled by Pallas.
    tile_n = max(8, min(int(tile_n), ((nb + 7) // 8) * 8))
    grid = (pl.cdiv(nb, tile_n),)

    cd = compute_dtype
    bond_c = bond.astype(cd)
    atoms_c = atoms.astype(cd)
    glob_c = glob.astype(cd)
    w1b_c, w1a_c, w1g_c = w1b.astype(cd), w1a.astype(cd), w1g.astype(cd)
    w2_c, w3_c = w2.astype(cd), w3.astype(cd)
    # Biases stay f32 (added after f32 accumulation).
    b1f = b1.astype(jnp.float32).reshape(1, -1)
    b2f = b2.astype(jnp.float32).reshape(1, -1)
    b3f = b3.astype(jnp.float32).reshape(1, -1)

    def row_spec(width):
        return pl.BlockSpec((tile_n, width), lambda i: (i, 0))

    def full_spec(shape):
        return pl.BlockSpec(shape, lambda i: (0, 0))

    return pl.pallas_call(
        _mlp_kernel,
        out_shape=jax.ShapeDtypeStruct((nb, h3), jnp.float32),
        grid_spec=pltpu.PrefetchScalarGridSpec(
            num_scalar_prefetch=0,
            grid=grid,
            in_specs=[
                row_spec(db),            # bond rows
                row_spec(da2),           # gathered atom rows
                row_spec(dg),            # gathered global rows
                full_spec((db, h1)),     # W1 (bond block)
                full_spec((da2, h1)),    # W1 (atom block)
                full_spec((dg, h1)),     # W1 (global block)
                full_spec((1, h1)),      # b1
                full_spec((h1, h2)),     # W2
                full_spec((1, h2)),      # b2
                full_spec((h2, h3)),     # W3
                full_spec((1, h3)),      # b3
            ],
            out_specs=pl.BlockSpec((tile_n, h3), lambda i: (i, 0)),
        ),
        compiler_params=pltpu.CompilerParams(
            dimension_semantics=("parallel",)),
    )(bond_c, atoms_c, glob_c, w1b_c, w1a_c, w1g_c, b1f, w2_c, b2f, w3_c, b3f)


def bond_update_layer_forward(bond_feats, atom_feats, global_feats,
                              bond2atom, bond2global, params, *,
                              tile_n=1024, compute_dtype=jnp.bfloat16):
    """Full BondUpdateLayer.forward.

    bond_feats:   (Nb, Db)  master node 'bond' features
    atom_feats:   (Na, Da)  attn node 'atom' features
    global_feats: (Ng, Dg)  attn node 'global' features
    bond2atom:    (Nb, 2)   int32 indices of the two atoms of each bond
    bond2global:  (Nb,)     int32 index of the global node for each bond
    """
    nb = bond_feats.shape[0]
    # a2b: mailbox of 2 atom messages per bond, flattened -> (Nb, 2*Da)
    atoms = atom_feats[bond2atom].reshape(nb, -1)
    # g2b: one global message per bond -> (Nb, Dg)
    glob = global_feats[bond2global]
    w1, b1, w2, b2, w3, b3 = params
    return bond_mlp_pallas(bond_feats, atoms, glob, w1, b1, w2, b2, w3, b3,
                           tile_n=tile_n, compute_dtype=compute_dtype)


def _reference_forward(bond_feats, atom_feats, global_feats,
                       bond2atom, bond2global, params):
    atoms = atom_feats[bond2atom].reshape(bond_feats.shape[0], -1)
    ft = jnp.concatenate(
        [bond_feats, atoms, global_feats[bond2global]], axis=1)
    w1, b1, w2, b2, w3, b3 = params
    h = _softplus(ft @ w1 + b1)
    h = _softplus(h @ w2 + b2)
    return h @ w3 + b3


if __name__ == "__main__":
    key = jax.random.PRNGKey(0)

    # in_feats = {'bond': 8, 'atom': 12, 'global': 6}
    Db, Da, Dg = 8, 12, 6
    in_size = Db + 2 * Da + Dg            # 38
    out_feats = [32, 32, 16]              # num_fc_layers = 3

    Nb, Na, Ng = 200, 80, 3               # bonds, atoms, graphs (global nodes)

    ks = jax.random.split(key, 10)
    bond_feats = jax.random.normal(ks[0], (Nb, Db), jnp.float32)
    atom_feats = jax.random.normal(ks[1], (Na, Da), jnp.float32)
    global_feats = jax.random.normal(ks[2], (Ng, Dg), jnp.float32)

    bond2atom = jax.random.randint(ks[3], (Nb, 2), 0, Na, jnp.int32)
    bond2global = jax.random.randint(ks[4], (Nb,), 0, Ng, jnp.int32)

    # deterministic param init (PyTorch Linear-style uniform +-1/sqrt(fan_in))
    def linear_init(kw, kb, fan_in, fan_out):
        lim = 1.0 / jnp.sqrt(jnp.float32(fan_in))
        w = jax.random.uniform(kw, (fan_in, fan_out), jnp.float32, -lim, lim)
        b = jax.random.uniform(kb, (1, fan_out), jnp.float32, -lim, lim)
        return w, b

    w1, b1 = linear_init(ks[5], ks[6], in_size, out_feats[0])
    w2, b2 = linear_init(ks[7], ks[8], out_feats[0], out_feats[1])
    kw3, kb3 = jax.random.split(ks[9])
    w3, b3 = linear_init(kw3, kb3, out_feats[1], out_feats[2])
    params = (w1, b1, w2, b2, w3, b3)

    ref = _reference_forward(
        bond_feats, atom_feats, global_feats, bond2atom, bond2global, params)

    # f32 compute path: close parity with the reference
    out_f32 = bond_update_layer_forward(
        bond_feats, atom_feats, global_feats, bond2atom, bond2global, params,
        compute_dtype=jnp.float32)
    out_f32 = jax.block_until_ready(out_f32)
    assert out_f32.shape == (Nb, out_feats[-1])
    assert jnp.allclose(out_f32, ref, atol=1e-3, rtol=1e-3)

    # bf16 compute path (default / fast): f32 accumulation, bf16-level tolerance
    out_bf16 = bond_update_layer_forward(
        bond_feats, atom_feats, global_feats, bond2atom, bond2global, params)
    out_bf16 = jax.block_until_ready(out_bf16)
    assert out_bf16.shape == (Nb, out_feats[-1])
    assert jnp.allclose(out_bf16, ref, atol=1e-1, rtol=5e-2)

    print("KERNEL_OK")
</pallas_src>

<mosaic_0001>
module attributes {stable_mosaic.version = 11 : i64} {
  func.func @_mlp_kernel(%arg0: i32, %arg1: memref<200x8xf32, #tpu.memory_space<vmem>>, %arg2: memref<200x24xf32, #tpu.memory_space<vmem>>, %arg3: memref<200x6xf32, #tpu.memory_space<vmem>>, %arg4: memref<8x32xf32, #tpu.memory_space<vmem>>, %arg5: memref<24x32xf32, #tpu.memory_space<vmem>>, %arg6: memref<6x32xf32, #tpu.memory_space<vmem>>, %arg7: memref<1x32xf32, #tpu.memory_space<vmem>>, %arg8: memref<32x32xf32, #tpu.memory_space<vmem>>, %arg9: memref<1x32xf32, #tpu.memory_space<vmem>>, %arg10: memref<32x16xf32, #tpu.memory_space<vmem>>, %arg11: memref<1x16xf32, #tpu.memory_space<vmem>>, %arg12: memref<200x16xf32, #tpu.memory_space<vmem>>) attributes {dimension_semantics = [#tpu.dimension_semantics<parallel>], iteration_bounds = array<i64: 1>, scalar_prefetch = 0 : i64, scratch_operands = 0 : i64, tpu.core_type = #tpu.core_type<tc>, window_params = [{transform_indices = @transform_0, window_bounds = array<i64: 200, 8>}, {transform_indices = @transform_1, window_bounds = array<i64: 200, 24>}, {transform_indices = @transform_2, window_bounds = array<i64: 200, 6>}, {pipeline_mode = #tpu.pipeline_mode<synchronous>, transform_indices = @transform_3, window_bounds = array<i64: 8, 32>}, {pipeline_mode = #tpu.pipeline_mode<synchronous>, transform_indices = @transform_4, window_bounds = array<i64: 24, 32>}, {pipeline_mode = #tpu.pipeline_mode<synchronous>, transform_indices = @transform_5, window_bounds = array<i64: 6, 32>}, {pipeline_mode = #tpu.pipeline_mode<synchronous>, transform_indices = @transform_6, window_bounds = array<i64: 1, 32>}, {pipeline_mode = #tpu.pipeline_mode<synchronous>, transform_indices = @transform_7, window_bounds = array<i64: 32, 32>}, {pipeline_mode = #tpu.pipeline_mode<synchronous>, transform_indices = @transform_8, window_bounds = array<i64: 1, 32>}, {pipeline_mode = #tpu.pipeline_mode<synchronous>, transform_indices = @transform_9, window_bounds = array<i64: 32, 16>}, {pipeline_mode = #tpu.pipeline_mode<synchronous>, transform_indices = @transform_10, window_bounds = array<i64: 1, 16>}, {transform_indices = @transform_11, window_bounds = array<i64: 200, 16>}]} {
    %c0 = arith.constant 0 : index
    %c0_0 = arith.constant 0 : index
    %0 = vector.load %arg1[%c0, %c0_0] : memref<200x8xf32, #tpu.memory_space<vmem>>, vector<200x8xf32>
    %c0_1 = arith.constant 0 : index
    %c0_2 = arith.constant 0 : index
    %1 = vector.load %arg4[%c0_1, %c0_2] : memref<8x32xf32, #tpu.memory_space<vmem>>, vector<8x32xf32>
    %cst = arith.constant dense<0.000000e+00> : vector<200x32xf32>
    %2 = tpu.matmul %0, %1, %cst {dimension_numbers = #tpu.dot_dimension_numbers<[1], [0], [0], [1], [0, 0, 1, 1], [], []>} : vector<200x8xf32>, vector<8x32xf32>, vector<200x32xf32> -> vector<200x32xf32>
    %c0_3 = arith.constant 0 : index
    %c0_4 = arith.constant 0 : index
    %3 = vector.load %arg2[%c0_3, %c0_4] : memref<200x24xf32, #tpu.memory_space<vmem>>, vector<200x24xf32>
    %c0_5 = arith.constant 0 : index
    %c0_6 = arith.constant 0 : index
    %4 = vector.load %arg5[%c0_5, %c0_6] : memref<24x32xf32, #tpu.memory_space<vmem>>, vector<24x32xf32>
    %cst_7 = arith.constant dense<0.000000e+00> : vector<200x32xf32>
    %5 = tpu.matmul %3, %4, %cst_7 {dimension_numbers = #tpu.dot_dimension_numbers<[1], [0], [0], [1], [0, 0, 1, 1], [], []>} : vector<200x24xf32>, vector<24x32xf32>, vector<200x32xf32> -> vector<200x32xf32>
    %6 = arith.addf %2, %5 : vector<200x32xf32>
    %c0_8 = arith.constant 0 : index
    %c0_9 = arith.constant 0 : index
    %7 = vector.load %arg3[%c0_8, %c0_9] : memref<200x6xf32, #tpu.memory_space<vmem>>, vector<200x6xf32>
    %c0_10 = arith.constant 0 : index
    %c0_11 = arith.constant 0 : index
    %8 = vector.load %arg6[%c0_10, %c0_11] : memref<6x32xf32, #tpu.memory_space<vmem>>, vector<6x32xf32>
    %cst_12 = arith.constant dense<0.000000e+00> : vector<200x32xf32>
    %9 = tpu.matmul %7, %8, %cst_12 {dimension_numbers = #tpu.dot_dimension_numbers<[1], [0], [0], [1], [0, 0, 1, 1], [], []>} : vector<200x6xf32>, vector<6x32xf32>, vector<200x32xf32> -> vector<200x32xf32>
    %10 = arith.addf %6, %9 : vector<200x32xf32>
    %c0_13 = arith.constant 0 : index
    %c0_14 = arith.constant 0 : index
    %11 = vector.load %arg7[%c0_13, %c0_14] : memref<1x32xf32, #tpu.memory_space<vmem>>, vector<1x32xf32>
    %12 = vector.broadcast %11 : vector<1x32xf32> to vector<200x32xf32>
    %13 = arith.addf %10, %12 : vector<200x32xf32>
    %cst_15 = arith.constant 0.000000e+00 : f32
    %14 = vector.broadcast %cst_15 : f32 to vector<200x32xf32>
    %15 = arith.maximumf %13, %14 : vector<200x32xf32>
    %16 = math.absf %13 : vector<200x32xf32>
    %cst_16 = arith.constant 0.000000e+00 : f32
    %17 = vector.broadcast %cst_16 : f32 to vector<200x32xf32>
    %18 = arith.subf %17, %16 : vector<200x32xf32>
    %19 = math.exp %18 : vector<200x32xf32>
    %20 = math.log1p %19 : vector<200x32xf32>
    %21 = arith.addf %15, %20 : vector<200x32xf32>
    %c0_17 = arith.constant 0 : index
    %c0_18 = arith.constant 0 : index
    %22 = vector.load %arg8[%c0_17, %c0_18] : memref<32x32xf32, #tpu.memory_space<vmem>>, vector<32x32xf32>
    %cst_19 = arith.constant dense<0.000000e+00> : vector<200x32xf32>
    %23 = tpu.matmul %21, %22, %cst_19 {dimension_numbers = #tpu.dot_dimension_numbers<[1], [0], [0], [1], [0, 0, 1, 1], [], []>} : vector<200x32xf32>, vector<32x32xf32>, vector<200x32xf32> -> vector<200x32xf32>
    %c0_20 = arith.constant 0 : index
    %c0_21 = arith.constant 0 : index
    %24 = vector.load %arg9[%c0_20, %c0_21] : memref<1x32xf32, #tpu.memory_space<vmem>>, vector<1x32xf32>
    %25 = vector.broadcast %24 : vector<1x32xf32> to vector<200x32xf32>
    %26 = arith.addf %23, %25 : vector<200x32xf32>
    %cst_22 = arith.constant 0.000000e+00 : f32
    %27 = vector.broadcast %cst_22 : f32 to vector<200x32xf32>
    %28 = arith.maximumf %26, %27 : vector<200x32xf32>
    %29 = math.absf %26 : vector<200x32xf32>
    %cst_23 = arith.constant 0.000000e+00 : f32
    %30 = vector.broadcast %cst_23 : f32 to vector<200x32xf32>
    %31 = arith.subf %30, %29 : vector<200x32xf32>
    %32 = math.exp %31 : vector<200x32xf32>
    %33 = math.log1p %32 : vector<200x32xf32>
    %34 = arith.addf %28, %33 : vector<200x32xf32>
    %c0_24 = arith.constant 0 : index
    %c0_25 = arith.constant 0 : index
    %35 = vector.load %arg10[%c0_24, %c0_25] : memref<32x16xf32, #tpu.memory_space<vmem>>, vector<32x16xf32>
    %cst_26 = arith.constant dense<0.000000e+00> : vector<200x16xf32>
    %36 = tpu.matmul %34, %35, %cst_26 {dimension_numbers = #tpu.dot_dimension_numbers<[1], [0], [0], [1], [0, 0, 1, 1], [], []>} : vector<200x32xf32>, vector<32x16xf32>, vector<200x16xf32> -> vector<200x16xf32>
    %c0_27 = arith.constant 0 : index
    %c0_28 = arith.constant 0 : index
    %37 = vector.load %arg11[%c0_27, %c0_28] : memref<1x16xf32, #tpu.memory_space<vmem>>, vector<1x16xf32>
    %38 = vector.broadcast %37 : vector<1x16xf32> to vector<200x16xf32>
    %39 = arith.addf %36, %38 : vector<200x16xf32>
    %c0_29 = arith.constant 0 : index
    %c0_30 = arith.constant 0 : index
    %40 = vector.load %arg12[%c0_29, %c0_30] : memref<200x16xf32, #tpu.memory_space<vmem>>, vector<200x16xf32>
    tpu.vector_store %arg12[%c0_29, %c0_30], %39 {strides = array<i32>} : memref<200x16xf32, #tpu.memory_space<vmem>>, vector<200x16xf32>,
    return
  }
  func.func @transform_0(%arg0: i32) -> (i32, i32) {
    %c0_i32 = arith.constant 0 : i32
    %c0_i32_0 = arith.constant 0 : i32
    return %arg0, %c0_i32 : i32, i32
  }
  func.func @transform_1(%arg0: i32) -> (i32, i32) {
    %c0_i32 = arith.constant 0 : i32
    %c0_i32_0 = arith.constant 0 : i32
    return %arg0, %c0_i32 : i32, i32
  }
  func.func @transform_2(%arg0: i32) -> (i32, i32) {
    %c0_i32 = arith.constant 0 : i32
    %c0_i32_0 = arith.constant 0 : i32
    return %arg0, %c0_i32 : i32, i32
  }
  func.func @transform_3(%arg0: i32) -> (i32, i32) {
    %c0_i32 = arith.constant 0 : i32
    %c0_i32_0 = arith.constant 0 : i32
    %c0_i32_1 = arith.constant 0 : i32
    return %c0_i32, %c0_i32_0 : i32, i32
  }
  func.func @transform_4(%arg0: i32) -> (i32, i32) {
    %c0_i32 = arith.constant 0 : i32
    %c0_i32_0 = arith.constant 0 : i32
    %c0_i32_1 = arith.constant 0 : i32
    return %c0_i32, %c0_i32_0 : i32, i32
  }
  func.func @transform_5(%arg0: i32) -> (i32, i32) {
    %c0_i32 = arith.constant 0 : i32
    %c0_i32_0 = arith.constant 0 : i32
    %c0_i32_1 = arith.constant 0 : i32
    return %c0_i32, %c0_i32_0 : i32, i32
  }
  func.func @transform_6(%arg0: i32) -> (i32, i32) {
    %c0_i32 = arith.constant 0 : i32
    %c0_i32_0 = arith.constant 0 : i32
    %c0_i32_1 = arith.constant 0 : i32
    return %c0_i32, %c0_i32_0 : i32, i32
  }
  func.func @transform_7(%arg0: i32) -> (i32, i32) {
    %c0_i32 = arith.constant 0 : i32
    %c0_i32_0 = arith.constant 0 : i32
    %c0_i32_1 = arith.constant 0 : i32
    return %c0_i32, %c0_i32_0 : i32, i32
  }
  func.func @transform_8(%arg0: i32) -> (i32, i32) {
    %c0_i32 = arith.constant 0 : i32
    %c0_i32_0 = arith.constant 0 : i32
    %c0_i32_1 = arith.constant 0 : i32
    return %c0_i32, %c0_i32_0 : i32, i32
  }
  func.func @transform_9(%arg0: i32) -> (i32, i32) {
    %c0_i32 = arith.constant 0 : i32
    %c0_i32_0 = arith.constant 0 : i32
    %c0_i32_1 = arith.constant 0 : i32
    return %c0_i32, %c0_i32_0 : i32, i32
  }
  func.func @transform_10(%arg0: i32) -> (i32, i32) {
    %c0_i32 = arith.constant 0 : i32
    %c0_i32_0 = arith.constant 0 : i32
    %c0_i32_1 = arith.constant 0 : i32
    return %c0_i32, %c0_i32_0 : i32, i32
  }
  func.func @transform_11(%arg0: i32) -> (i32, i32) {
    %c0_i32 = arith.constant 0 : i32
    %c0_i32_0 = arith.constant 0 : i32
    return %arg0, %c0_i32 : i32, i32
  }
}

</mosaic_0001>

<llo_original>
// kernel: tpu_custom_call.1
$region0: #{tpu_custom_call.1}
  #allocation0 [shape = 'u32[]', space=smem, size = 0x4, offset = 0x4, fixed_abs, tag = 'smem constant byte address 0x4 - core index']
  #allocation1 [shape = 'u32[72,128]{1,0:T(1,128)}', space=vmem, size = 0x9000, scoped, tag = 'internal scratch']
  %s0 = inlined_call_operand.vmem [shape: f32[200,8], index: 0, kind: input, shape index: {}]
  %s1 = inlined_call_operand.vmem [shape: f32[200,24], index: 1, kind: input, shape index: {}]
  %s2 = inlined_call_operand.vmem [shape: f32[200,6], index: 2, kind: input, shape index: {}]
  %s3 = inlined_call_operand.vmem [shape: f32[8,32], index: 3, kind: input, shape index: {}]
  %s4 = inlined_call_operand.vmem [shape: f32[24,32], index: 4, kind: input, shape index: {}]
  %s5 = inlined_call_operand.vmem [shape: f32[6,32], index: 5, kind: input, shape index: {}]
  %s6 = inlined_call_operand.vmem [shape: f32[1,32], index: 6, kind: input, shape index: {}]
  %s7 = inlined_call_operand.vmem [shape: f32[32,32], index: 7, kind: input, shape index: {}]
  %s8 = inlined_call_operand.vmem [shape: f32[1,32], index: 8, kind: input, shape index: {}]
  %s9 = inlined_call_operand.vmem [shape: f32[32,16], index: 9, kind: input, shape index: {}]
  %s10 = inlined_call_operand.vmem [shape: f32[1,16], index: 10, kind: input, shape index: {}]
  %s11 = inlined_call_operand.vmem [shape: f32[200,16], index: 11, kind: output, shape index: {}]
  %s12 = sld [smem:[#allocation0]]
  $region54: #{tpu_custom_call.1} parent=0
    _
  %s14 = ssub.s32 1, %s12
  %s15 = scalar_select 0, %s14, %s12
  // Predicated region
  $region2: #{tpu_custom_call.1} parent=0 // pred_check
    _
  $region3: #{tpu_custom_call.1} parent=0 // pred_check_branch
    %17 = sbr.rel (0) target = $region5
  $region4: #{tpu_custom_call.1} parent=0 // pred_region
    _
  $region5: #{tpu_custom_call.1} parent=0 // pred_fallthru
    _
  // Predicated region
  $region6: #{tpu_custom_call.1} parent=0 // pred_check
    _
  $region7: #{tpu_custom_call.1} parent=0 // pred_check_branch
    %19 = sbr.rel (0) target = $region9
  $region8: #{tpu_custom_call.1} parent=0 // pred_region
    _
  $region9: #{tpu_custom_call.1} parent=0 // pred_fallthru
    _
  // Predicated region
  $region10: #{tpu_custom_call.1} parent=0 // pred_check
    _
  $region11: #{tpu_custom_call.1} parent=0 // pred_check_branch
    %21 = sbr.rel (0) target = $region13
  $region12: #{tpu_custom_call.1} parent=0 // pred_region
    _
  $region13: #{tpu_custom_call.1} parent=0 // pred_fallthru
    _
  // Predicated region
  $region14: #{tpu_custom_call.1} parent=0 // pred_check
    _
  $region15: #{tpu_custom_call.1} parent=0 // pred_check_branch
    %23 = sbr.rel (0) target = $region17
  $region16: #{tpu_custom_call.1} parent=0 // pred_region
    _
  $region17: #{tpu_custom_call.1} parent=0 // pred_fallthru
    _
  // Predicated region
  $region18: #{tpu_custom_call.1} parent=0 // pred_check
    _
  $region19: #{tpu_custom_call.1} parent=0 // pred_check_branch
    %25 = sbr.rel (0) target = $region21
  $region20: #{tpu_custom_call.1} parent=0 // pred_region
    _
  $region21: #{tpu_custom_call.1} parent=0 // pred_fallthru
    _
  // Predicated region
  $region22: #{tpu_custom_call.1} parent=0 // pred_check
    _
  $region23: #{tpu_custom_call.1} parent=0 // pred_check_branch
    %27 = sbr.rel (0) target = $region25
  $region24: #{tpu_custom_call.1} parent=0 // pred_region
    _
  $region25: #{tpu_custom_call.1} parent=0 // pred_fallthru
    _
  // Predicated region
  $region26: #{tpu_custom_call.1} parent=0 // pred_check
    _
  $region27: #{tpu_custom_call.1} parent=0 // pred_check_branch
    %29 = sbr.rel (0) target = $region29
  $region28: #{tpu_custom_call.1} parent=0 // pred_region
    _
  $region29: #{tpu_custom_call.1} parent=0 // pred_fallthru
    _
  // Predicated region
  $region30: #{tpu_custom_call.1} parent=0 // pred_check
    _
  $region31: #{tpu_custom_call.1} parent=0 // pred_check_branch
    %31 = sbr.rel (0) target = $region33
  $region32: #{tpu_custom_call.1} parent=0 // pred_region
    _
  $region33: #{tpu_custom_call.1} parent=0 // pred_fallthru
    _
  // Predicated region
  $region34: #{tpu_custom_call.1} parent=0 // pred_check
    _
  $region35: #{tpu_custom_call.1} parent=0 // pred_check_branch
    %33 = sbr.rel (0) target = $region37
  $region36: #{tpu_custom_call.1} parent=0 // pred_region
    _
  $region37: #{tpu_custom_call.1} parent=0 // pred_fallthru
    _
  // Predicated region
  $region38: #{tpu_custom_call.1} parent=0 // pred_check
    _
  $region39: #{tpu_custom_call.1} parent=0 // pred_check_branch
    %35 = sbr.rel (0) target = $region41
  $region40: #{tpu_custom_call.1} parent=0 // pred_region
    _
  $region41: #{tpu_custom_call.1} parent=0 // pred_fallthru
    _
  // Predicated region
  $region42: #{tpu_custom_call.1} parent=0 // pred_check
    _
  $region43: #{tpu_custom_call.1} parent=0 // pred_check_branch
    %37 = sbr.rel (0) target = $region45
  $region44: #{tpu_custom_call.1} parent=0 // pred_region
    _
  $region45: #{tpu_custom_call.1} parent=0 // pred_fallthru
    _
  %v38 = vld [vmem:[%s0] sm:$0xff]
  %v39 = vld [vmem:[%s0 + $0x8] sm:$0xff]
  %v40 = vld [vmem:[%s0 + $0x10] sm:$0xff]
  %v41 = vld [vmem:[%s0 + $0x18] sm:$0xff]
  %v42 = vld [vmem:[%s0 + $0x20] sm:$0xff]
  %v43 = vld [vmem:[%s0 + $0x28] sm:$0xff]
  %v44 = vld [vmem:[%s0 + $0x30] sm:$0xff]
  %v45 = vld [vmem:[%s0 + $0x38] sm:$0xff]
  %v46 = vld [vmem:[%s0 + $0x40] sm:$0xff]
  %v47 = vld [vmem:[%s0 + $0x48] sm:$0xff]
  %v48 = vld [vmem:[%s0 + $0x50] sm:$0xff]
  %v49 = vld [vmem:[%s0 + $0x58] sm:$0xff]
  %v50 = vld [vmem:[%s0 + $0x60] sm:$0xff]
  %v51 = vld [vmem:[%s0 + $0x68] sm:$0xff]
  %v52 = vld [vmem:[%s0 + $0x70] sm:$0xff]
  %v53 = vld [vmem:[%s0 + $0x78] sm:$0xff]
  %v54 = vld [vmem:[%s0 + $0x80] sm:$0xff]
  %v55 = vld [vmem:[%s0 + $0x88] sm:$0xff]
  %v56 = vld [vmem:[%s0 + $0x90] sm:$0xff]
  %v57 = vld [vmem:[%s0 + $0x98] sm:$0xff]
  %v58 = vld [vmem:[%s0 + $0xa0] sm:$0xff]
  %v59 = vld [vmem:[%s0 + $0xa8] sm:$0xff]
  %v60 = vld [vmem:[%s0 + $0xb0] sm:$0xff]
  %v61 = vld [vmem:[%s0 + $0xb8] sm:$0xff]
  %v62 = vld [vmem:[%s0 + $0xc0] sm:$0xff]
  %v63 = vld [vmem:[%s3] sm:$0xff]
  %v64 = vld [vmem:[%s1] sm:$0xff]
  %v65 = vld [vmem:[%s1 + $0x8] sm:$0xff]
  %v66 = vld [vmem:[%s1 + $0x10] sm:$0xff]
  %v67 = vld [vmem:[%s1 + $0x18] sm:$0xff]
  %v68 = vld [vmem:[%s1 + $0x20] sm:$0xff]
  %v69 = vld [vmem:[%s1 + $0x28] sm:$0xff]
  %v70 = vld [vmem:[%s1 + $0x30] sm:$0xff]
  %v71 = vld [vmem:[%s1 + $0x38] sm:$0xff]
  %v72 = vld [vmem:[%s1 + $0x40] sm:$0xff]
  %v73 = vld [vmem:[%s1 + $0x48] sm:$0xff]
  %v74 = vld [vmem:[%s1 + $0x50] sm:$0xff]
  %v75 = vld [vmem:[%s1 + $0x58] sm:$0xff]
  %v76 = vld [vmem:[%s1 + $0x60] sm:$0xff]
  %v77 = vld [vmem:[%s1 + $0x68] sm:$0xff]
  %v78 = vld [vmem:[%s1 + $0x70] sm:$0xff]
  %v79 = vld [vmem:[%s1 + $0x78] sm:$0xff]
  %v80 = vld [vmem:[%s1 + $0x80] sm:$0xff]
  %v81 = vld [vmem:[%s1 + $0x88] sm:$0xff]
  %v82 = vld [vmem:[%s1 + $0x90] sm:$0xff]
  %v83 = vld [vmem:[%s1 + $0x98] sm:$0xff]
  %v84 = vld [vmem:[%s1 + $0xa0] sm:$0xff]
  %v85 = vld [vmem:[%s1 + $0xa8] sm:$0xff]
  %v86 = vld [vmem:[%s1 + $0xb0] sm:$0xff]
  %v87 = vld [vmem:[%s1 + $0xb8] sm:$0xff]
  %v88 = vld [vmem:[%s1 + $0xc0] sm:$0xff]
  %v89 = vld [vmem:[%s4] sm:$0xff]
  %v90 = vld [vmem:[%s4 + $0x8] sm:$0xff]
  %v91 = vld [vmem:[%s4 + $0x10] sm:$0xff]
  %vm92 = vcmask 195584
  %v94 = vsel %vm92, %v64, 0
  %v97 = vsel %vm92, %v65, 0
  %v100 = vsel %vm92, %v66, 0
  %v103 = vsel %vm92, %v67, 0
  %v106 = vsel %vm92, %v68, 0
  %v109 = vsel %vm92, %v69, 0
  %v112 = vsel %vm92, %v70, 0
  %v115 = vsel %vm92, %v71, 0
  %v118 = vsel %vm92, %v72, 0
  %v121 = vsel %vm92, %v73, 0
  %v124 = vsel %vm92, %v74, 0
  %v127 = vsel %vm92, %v75, 0
  %v130 = vsel %vm92, %v76, 0
  %v133 = vsel %vm92, %v77, 0
  %v136 = vsel %vm92, %v78, 0
  %v139 = vsel %vm92, %v79, 0
  %v142 = vsel %vm92, %v80, 0
  %v145 = vsel %vm92, %v81, 0
  %v148 = vsel %vm92, %v82, 0
  %v151 = vsel %vm92, %v83, 0
  %v154 = vsel %vm92, %v84, 0
  %v157 = vsel %vm92, %v85, 0
  %v160 = vsel %vm92, %v86, 0
  %v163 = vsel %vm92, %v87, 0
  %v166 = vsel %vm92, %v88, 0
  %168 = vmatpush.msra.mxu0 0.0
  %169 = vmatpush.msra.mxu0 0.0
  %170 = vmatpush.msra.mxu0 0.0
  %171 = vmatpush.msra.mxu0 0.0
  %172 = vmatpush.msra.mxu0 0.0
  %173 = vmatpush.msra.mxu0 0.0
  %174 = vmatpush.msra.mxu0 0.0
  %175 = vmatpush.msra.mxu0 0.0
  %176 = vmatpush.msra.mxu0 0.0
  %177 = vmatpush.msra.mxu0 0.0
  %178 = vmatpush.msra.mxu0 0.0
  %179 = vmatpush.msra.mxu0 0.0
  %180 = vmatpush.msra.mxu0 0.0
  %181 = vmatpush.msra.mxu0 %v91
  %182 = vmatpush.msra.mxu0 %v90
  %183 = vmatpush.msra.mxu0 %v89
  %184 = vmatmul.f32.gmra.mxu0 %v94
  %v185 = vpop.f32.mrf.mxu0
  %v186 = vadd.f32 0.0, %v185
  %187 = vmatmul.f32.gmra.mxu0 %v97
  %v188 = vpop.f32.mrf.mxu0
  %v189 = vadd.f32 0.0, %v188
  %190 = vmatmul.f32.gmra.mxu0 %v100
  %v191 = vpop.f32.mrf.mxu0
  %v192 = vadd.f32 0.0, %v191
  %193 = vmatmul.f32.gmra.mxu0 %v103
  %v194 = vpop.f32.mrf.mxu0
  %v195 = vadd.f32 0.0, %v194
  %196 = vmatmul.f32.gmra.mxu0 %v106
  %v197 = vpop.f32.mrf.mxu0
  %v198 = vadd.f32 0.0, %v197
  %199 = vmatmul.f32.gmra.mxu0 %v109
  %v200 = vpop.f32.mrf.mxu0
  %v201 = vadd.f32 0.0, %v200
  %202 = vmatmul.f32.gmra.mxu0 %v112
  %v203 = vpop.f32.mrf.mxu0
  %v204 = vadd.f32 0.0, %v203
  %205 = vmatmul.f32.gmra.mxu0 %v115
  %v206 = vpop.f32.mrf.mxu0
  %v207 = vadd.f32 0.0, %v206
  %208 = vmatmul.f32.gmra.mxu0 %v118
  %v209 = vpop.f32.mrf.mxu0
  %v210 = vadd.f32 0.0, %v209
  %211 = vmatmul.f32.gmra.mxu0 %v121
  %v212 = vpop.f32.mrf.mxu0
  %v213 = vadd.f32 0.0, %v212
  %214 = vmatmul.f32.gmra.mxu0 %v124
  %v215 = vpop.f32.mrf.mxu0
  %v216 = vadd.f32 0.0, %v215
  %217 = vmatmul.f32.gmra.mxu0 %v127
  %v218 = vpop.f32.mrf.mxu0
  %v219 = vadd.f32 0.0, %v218
  %220 = vmatmul.f32.gmra.mxu0 %v130
  %v221 = vpop.f32.mrf.mxu0
  %v222 = vadd.f32 0.0, %v221
  %223 = vmatmul.f32.gmra.mxu0 %v133
  %v224 = vpop.f32.mrf.mxu0
  %v225 = vadd.f32 0.0, %v224
  %226 = vmatmul.f32.gmra.mxu0 %v136
  %v227 = vpop.f32.mrf.mxu0
  %v228 = vadd.f32 0.0, %v227
  %229 = vmatmul.f32.gmra.mxu0 %v139
  %v230 = vpop.f32.mrf.mxu0
  %v231 = vadd.f32 0.0, %v230
  %232 = vmatmul.f32.gmra.mxu0 %v142
  %v233 = vpop.f32.mrf.mxu0
  %v234 = vadd.f32 0.0, %v233
  %235 = vmatmul.f32.gmra.mxu0 %v145
  %v236 = vpop.f32.mrf.mxu0
  %v237 = vadd.f32 0.0, %v236
  %238 = vmatmul.f32.gmra.mxu0 %v148
  %v239 = vpop.f32.mrf.mxu0
  %v240 = vadd.f32 0.0, %v239
  %241 = vmatmul.f32.gmra.mxu0 %v151
  %v242 = vpop.f32.mrf.mxu0
  %v243 = vadd.f32 0.0, %v242
  %244 = vmatmul.f32.gmra.mxu0 %v154
  %v245 = vpop.f32.mrf.mxu0
  %v246 = vadd.f32 0.0, %v245
  %247 = vmatmul.f32.gmra.mxu0 %v157
  %v248 = vpop.f32.mrf.mxu0
  %v249 = vadd.f32 0.0, %v248
  %250 = vmatmul.f32.gmra.mxu0 %v160
  %v251 = vpop.f32.mrf.mxu0
  %v252 = vadd.f32 0.0, %v251
  %253 = vmatmul.f32.gmra.mxu0 %v163
  %v254 = vpop.f32.mrf.mxu0
  %v255 = vadd.f32 0.0, %v254
  %256 = vmatmul.f32.gmra.mxu0 %v166
  %v257 = vpop.f32.mrf.mxu0
  %v258 = vadd.f32 0.0, %v257
  %259 = vdwg.mxu0
  %vm260 = vcmask 64512
  %v262 = vsel %vm260, %v38, 0
  %v265 = vsel %vm260, %v39, 0
  %v268 = vsel %vm260, %v40, 0
  %v271 = vsel %vm260, %v41, 0
  %v274 = vsel %vm260, %v42, 0
  %v277 = vsel %vm260, %v43, 0
  %v280 = vsel %vm260, %v44, 0
  %v283 = vsel %vm260, %v45, 0
  %v286 = vsel %vm260, %v46, 0
  %v289 = vsel %vm260, %v47, 0
  %v292 = vsel %vm260, %v48, 0
  %v295 = vsel %vm260, %v49, 0
  %v298 = vsel %vm260, %v50, 0
  %v301 = vsel %vm260, %v51, 0
  %v304 = vsel %vm260, %v52, 0
  %v307 = vsel %vm260, %v53, 0
  %v310 = vsel %vm260, %v54, 0
  %v313 = vsel %vm260, %v55, 0
  %v316 = vsel %vm260, %v56, 0
  %v319 = vsel %vm260, %v57, 0
  %v322 = vsel %vm260, %v58, 0
  %v325 = vsel %vm260, %v59, 0
  %v328 = vsel %vm260, %v60, 0
  %v331 = vsel %vm260, %v61, 0
  %v334 = vsel %vm260, %v62, 0
  %336 = vmatpush.msra.mxu0 0.0
  %337 = vmatpush.msra.mxu0 0.0
  %338 = vmatpush.msra.mxu0 0.0
  %339 = vmatpush.msra.mxu0 0.0
  %340 = vmatpush.msra.mxu0 0.0
  %341 = vmatpush.msra.mxu0 0.0
  %342 = vmatpush.msra.mxu0 0.0
  %343 = vmatpush.msra.mxu0 0.0
  %344 = vmatpush.msra.mxu0 0.0
  %345 = vmatpush.msra.mxu0 0.0
  %346 = vmatpush.msra.mxu0 0.0
  %347 = vmatpush.msra.mxu0 0.0
  %348 = vmatpush.msra.mxu0 0.0
  %349 = vmatpush.msra.mxu0 0.0
  %350 = vmatpush.msra.mxu0 0.0
  %351 = vmatpush.msra.mxu0 %v63
  %352 = vmatmul.f32.gmra.mxu0 %v262
  %v353 = vpop.f32.mrf.mxu0
  %v354 = vadd.f32 %v186, %v353
  %355 = vmatmul.f32.gmra.mxu0 %v265
  %v356 = vpop.f32.mrf.mxu0
  %v357 = vadd.f32 %v189, %v356
  %358 = vmatmul.f32.gmra.mxu0 %v268
  %v359 = vpop.f32.mrf.mxu0
  %v360 = vadd.f32 %v192, %v359
  %361 = vmatmul.f32.gmra.mxu0 %v271
  %v362 = vpop.f32.mrf.mxu0
  %v363 = vadd.f32 %v195, %v362
  %364 = vmatmul.f32.gmra.mxu0 %v274
  %v365 = vpop.f32.mrf.mxu0
  %v366 = vadd.f32 %v198, %v365
  %367 = vmatmul.f32.gmra.mxu0 %v277
  %v368 = vpop.f32.mrf.mxu0
  %v369 = vadd.f32 %v201, %v368
  %370 = vmatmul.f32.gmra.mxu0 %v280
  %v371 = vpop.f32.mrf.mxu0
  %v372 = vadd.f32 %v204, %v371
  %373 = vmatmul.f32.gmra.mxu0 %v283
  %v374 = vpop.f32.mrf.mxu0
  %v375 = vadd.f32 %v207, %v374
  %376 = vmatmul.f32.gmra.mxu0 %v286
  %v377 = vpop.f32.mrf.mxu0
  %v378 = vadd.f32 %v210, %v377
  %379 = vmatmul.f32.gmra.mxu0 %v289
  %v380 = vpop.f32.mrf.mxu0
  %v381 = vadd.f32 %v213, %v380
  %382 = vmatmul.f32.gmra.mxu0 %v292
  %v383 = vpop.f32.mrf.mxu0
  %v384 = vadd.f32 %v216, %v383
  %385 = vmatmul.f32.gmra.mxu0 %v295
  %v386 = vpop.f32.mrf.mxu0
  %v387 = vadd.f32 %v219, %v386
  %388 = vmatmul.f32.gmra.mxu0 %v298
  %v389 = vpop.f32.mrf.mxu0
  %v390 = vadd.f32 %v222, %v389
  %391 = vmatmul.f32.gmra.mxu0 %v301
  %v392 = vpop.f32.mrf.mxu0
  %v393 = vadd.f32 %v225, %v392
  %394 = vmatmul.f32.gmra.mxu0 %v304
  %v395 = vpop.f32.mrf.mxu0
  %v396 = vadd.f32 %v228, %v395
  %397 = vmatmul.f32.gmra.mxu0 %v307
  %v398 = vpop.f32.mrf.mxu0
  %v399 = vadd.f32 %v231, %v398
  %400 = vmatmul.f32.gmra.mxu0 %v310
  %v401 = vpop.f32.mrf.mxu0
  %v402 = vadd.f32 %v234, %v401
  %403 = vmatmul.f32.gmra.mxu0 %v313
  %v404 = vpop.f32.mrf.mxu0
  %v405 = vadd.f32 %v237, %v404
  %406 = vmatmul.f32.gmra.mxu0 %v316
  %v407 = vpop.f32.mrf.mxu0
  %v408 = vadd.f32 %v240, %v407
  %409 = vmatmul.f32.gmra.mxu0 %v319
  %v410 = vpop.f32.mrf.mxu0
  %v411 = vadd.f32 %v243, %v410
  %412 = vmatmul.f32.gmra.mxu0 %v322
  %v413 = vpop.f32.mrf.mxu0
  %v414 = vadd.f32 %v246, %v413
  %415 = vmatmul.f32.gmra.mxu0 %v325
  %v416 = vpop.f32.mrf.mxu0
  %v417 = vadd.f32 %v249, %v416
  %418 = vmatmul.f32.gmra.mxu0 %v328
  %v419 = vpop.f32.mrf.mxu0
  %v420 = vadd.f32 %v252, %v419
  %421 = vmatmul.f32.gmra.mxu0 %v331
  %v422 = vpop.f32.mrf.mxu0
  %v423 = vadd.f32 %v255, %v422
  %424 = vmatmul.f32.gmra.mxu0 %v334
  %v425 = vpop.f32.mrf.mxu0
  %v426 = vadd.f32 %v258, %v425
  %427 = vdwg.mxu0
  %v428 = vld [vmem:[%s2] sm:$0xff]
  %v429 = vld [vmem:[%s2 + $0x8] sm:$0xff]
  %v430 = vld [vmem:[%s2 + $0x10] sm:$0xff]
  %v431 = vld [vmem:[%s2 + $0x18] sm:$0xff]
  %v432 = vld [vmem:[%s2 + $0x20] sm:$0xff]
  %v433 = vld [vmem:[%s2 + $0x28] sm:$0xff]
  %v434 = vld [vmem:[%s2 + $0x30] sm:$0xff]
  %v435 = vld [vmem:[%s2 + $0x38] sm:$0xff]
  %v436 = vld [vmem:[%s2 + $0x40] sm:$0xff]
  %v437 = vld [vmem:[%s2 + $0x48] sm:$0xff]
  %v438 = vld [vmem:[%s2 + $0x50] sm:$0xff]
  %v439 = vld [vmem:[%s2 + $0x58] sm:$0xff]
  %v440 = vld [vmem:[%s2 + $0x60] sm:$0xff]
  %v441 = vld [vmem:[%s2 + $0x68] sm:$0xff]
  %v442 = vld [vmem:[%s2 + $0x70] sm:$0xff]
  %v443 = vld [vmem:[%s2 + $0x78] sm:$0xff]
  %v444 = vld [vmem:[%s2 + $0x80] sm:$0xff]
  %v445 = vld [vmem:[%s2 + $0x88] sm:$0xff]
  %v446 = vld [vmem:[%s2 + $0x90] sm:$0xff]
  %v447 = vld [vmem:[%s2 + $0x98] sm:$0xff]
  %v448 = vld [vmem:[%s2 + $0xa0] sm:$0xff]
  %v449 = vld [vmem:[%s2 + $0xa8] sm:$0xff]
  %v450 = vld [vmem:[%s2 + $0xb0] sm:$0xff]
  %v451 = vld [vmem:[%s2 + $0xb8] sm:$0xff]
  %v452 = vld [vmem:[%s2 + $0xc0] sm:$0xff]
  %v453 = vld [vmem:[%s5] sm:$0x3f]
  %vm454 = vcmask 48128
  %v456 = vsel %vm454, %v428, 0
  %v459 = vsel %vm454, %v429, 0
  %v462 = vsel %vm454, %v430, 0
  %v465 = vsel %vm454, %v431, 0
  %v468 = vsel %vm454, %v432, 0
  %v471 = vsel %vm454, %v433, 0
  %v474 = vsel %vm454, %v434, 0
  %v477 = vsel %vm454, %v435, 0
  %v480 = vsel %vm454, %v436, 0
  %v483 = vsel %vm454, %v437, 0
  %v486 = vsel %vm454, %v438, 0
  %v489 = vsel %vm454, %v439, 0
  %v492 = vsel %vm454, %v440, 0
  %v495 = vsel %vm454, %v441, 0
  %v498 = vsel %vm454, %v442, 0
  %v501 = vsel %vm454, %v443, 0
  %v504 = vsel %vm454, %v444, 0
  %v507 = vsel %vm454, %v445, 0
  %v510 = vsel %vm454, %v446, 0
  %v513 = vsel %vm454, %v447, 0
  %v516 = vsel %vm454, %v448, 0
  %v519 = vsel %vm454, %v449, 0
  %v522 = vsel %vm454, %v450, 0
  %v525 = vsel %vm454, %v451, 0
  %v528 = vsel %vm454, %v452, 0
  %vm530 = vcmask 1045504
  %v532 = vsel %vm530, %v453, 0
  %534 = vmatpush.msra.mxu0 0.0
  %535 = vmatpush.msra.mxu0 0.0
  %536 = vmatpush.msra.mxu0 0.0
  %537 = vmatpush.msra.mxu0 0.0
  %538 = vmatpush.msra.mxu0 0.0
  %539 = vmatpush.msra.mxu0 0.0
  %540 = vmatpush.msra.mxu0 0.0
  %541 = vmatpush.msra.mxu0 0.0
  %542 = vmatpush.msra.mxu0 0.0
  %543 = vmatpush.msra.mxu0 0.0
  %544 = vmatpush.msra.mxu0 0.0
  %545 = vmatpush.msra.mxu0 0.0
  %546 = vmatpush.msra.mxu0 0.0
  %547 = vmatpush.msra.mxu0 0.0
  %548 = vmatpush.msra.mxu0 0.0
  %549 = vmatpush.msra.mxu0 %v532
  %550 = vmatmul.f32.gmra.mxu0 %v456
  %v551 = vpop.f32.mrf.mxu0
  %v552 = vadd.f32 0.0, %v551
  %553 = vmatmul.f32.gmra.mxu0 %v459
  %v554 = vpop.f32.mrf.mxu0
  %v555 = vadd.f32 0.0, %v554
  %556 = vmatmul.f32.gmra.mxu0 %v462
  %v557 = vpop.f32.mrf.mxu0
  %v558 = vadd.f32 0.0, %v557
  %559 = vmatmul.f32.gmra.mxu0 %v465
  %v560 = vpop.f32.mrf.mxu0
  %v561 = vadd.f32 0.0, %v560
  %562 = vmatmul.f32.gmra.mxu0 %v468
  %v563 = vpop.f32.mrf.mxu0
  %v564 = vadd.f32 0.0, %v563
  %565 = vmatmul.f32.gmra.mxu0 %v471
  %v566 = vpop.f32.mrf.mxu0
  %v567 = vadd.f32 0.0, %v566
  %568 = vmatmul.f32.gmra.mxu0 %v474
  %v569 = vpop.f32.mrf.mxu0
  %v570 = vadd.f32 0.0, %v569
  %571 = vmatmul.f32.gmra.mxu0 %v477
  %v572 = vpop.f32.mrf.mxu0
  %v573 = vadd.f32 0.0, %v572
  %574 = vmatmul.f32.gmra.mxu0 %v480
  %v575 = vpop.f32.mrf.mxu0
  %v576 = vadd.f32 0.0, %v575
  %577 = vmatmul.f32.gmra.mxu0 %v483
  %v578 = vpop.f32.mrf.mxu0
  %v579 = vadd.f32 0.0, %v578
  %580 = vmatmul.f32.gmra.mxu0 %v486
  %v581 = vpop.f32.mrf.mxu0
  %v582 = vadd.f32 0.0, %v581
  %583 = vmatmul.f32.gmra.mxu0 %v489
  %v584 = vpop.f32.mrf.mxu0
  %v585 = vadd.f32 0.0, %v584
  %586 = vmatmul.f32.gmra.mxu0 %v492
  %v587 = vpop.f32.mrf.mxu0
  %v588 = vadd.f32 0.0, %v587
  %589 = vmatmul.f32.gmra.mxu0 %v495
  %v590 = vpop.f32.mrf.mxu0
  %v591 = vadd.f32 0.0, %v590
  %592 = vmatmul.f32.gmra.mxu0 %v498
  %v593 = vpop.f32.mrf.mxu0
  %v594 = vadd.f32 0.0, %v593
  %595 = vmatmul.f32.gmra.mxu0 %v501
  %v596 = vpop.f32.mrf.mxu0
  %v597 = vadd.f32 0.0, %v596
  %598 = vmatmul.f32.gmra.mxu0 %v504
  %v599 = vpop.f32.mrf.mxu0
  %v600 = vadd.f32 0.0, %v599
  %601 = vmatmul.f32.gmra.mxu0 %v507
  %v602 = vpop.f32.mrf.mxu0
  %v603 = vadd.f32 0.0, %v602
  %604 = vmatmul.f32.gmra.mxu0 %v510
  %v605 = vpop.f32.mrf.mxu0
  %v606 = vadd.f32 0.0, %v605
  %607 = vmatmul.f32.gmra.mxu0 %v513
  %v608 = vpop.f32.mrf.mxu0
  %v609 = vadd.f32 0.0, %v608
  %610 = vmatmul.f32.gmra.mxu0 %v516
  %v611 = vpop.f32.mrf.mxu0
  %v612 = vadd.f32 0.0, %v611
  %613 = vmatmul.f32.gmra.mxu0 %v519
  %v614 = vpop.f32.mrf.mxu0
  %v615 = vadd.f32 0.0, %v614
  %616 = vmatmul.f32.gmra.mxu0 %v522
  %v617 = vpop.f32.mrf.mxu0
  %v618 = vadd.f32 0.0, %v617
  %619 = vmatmul.f32.gmra.mxu0 %v525
  %v620 = vpop.f32.mrf.mxu0
  %v621 = vadd.f32 0.0, %v620
  %622 = vmatmul.f32.gmra.mxu0 %v528
  %v623 = vpop.f32.mrf.mxu0
  %v624 = vadd.f32 0.0, %v623
  %625 = vdwg.mxu0
  %v626 = vadd.f32 %v354, %v552
  %v627 = vadd.f32 %v357, %v555
  %v628 = vadd.f32 %v360, %v558
  %v629 = vadd.f32 %v363, %v561
  %v630 = vadd.f32 %v366, %v564
  %v631 = vadd.f32 %v369, %v567
  %v632 = vadd.f32 %v372, %v570
  %v633 = vadd.f32 %v375, %v573
  %v634 = vadd.f32 %v378, %v576
  %v635 = vadd.f32 %v381, %v579
  %v636 = vadd.f32 %v384, %v582
  %v637 = vadd.f32 %v387, %v585
  %v638 = vadd.f32 %v390, %v588
  %v639 = vadd.f32 %v393, %v591
  %v640 = vadd.f32 %v396, %v594
  %v641 = vadd.f32 %v399, %v597
  %v642 = vadd.f32 %v402, %v600
  %v643 = vadd.f32 %v405, %v603
  %v644 = vadd.f32 %v408, %v606
  %v645 = vadd.f32 %v411, %v609
  %v646 = vadd.f32 %v414, %v612
  %v647 = vadd.f32 %v417, %v615
  %v648 = vadd.f32 %v420, %v618
  %v649 = vadd.f32 %v423, %v621
  %v650 = vadd.f32 %v426, %v624
  %v651 = vld [vmem:[%s6] sm:$0x1]
  %v653 = vperm.slane %v651, 0
  %v655 = vadd.f32 %v626, %v653
  %v656 = vadd.f32 %v627, %v653
  %v657 = vadd.f32 %v628, %v653
  %v658 = vadd.f32 %v629, %v653
  %v659 = vadd.f32 %v630, %v653
  %v660 = vadd.f32 %v631, %v653
  %v661 = vadd.f32 %v632, %v653
  %v662 = vadd.f32 %v633, %v653
  %v663 = vadd.f32 %v634, %v653
  %v664 = vadd.f32 %v635, %v653
  %v665 = vadd.f32 %v636, %v653
  %v666 = vadd.f32 %v637, %v653
  %v667 = vadd.f32 %v638, %v653
  %v668 = vadd.f32 %v639, %v653
  %v669 = vadd.f32 %v640, %v653
  %v670 = vadd.f32 %v641, %v653
  %v671 = vadd.f32 %v642, %v653
  %v672 = vadd.f32 %v643, %v653
  %v673 = vadd.f32 %v644, %v653
  %v674 = vadd.f32 %v645, %v653
  %v675 = vadd.f32 %v646, %v653
  %v676 = vadd.f32 %v647, %v653
  %v677 = vadd.f32 %v648, %v653
  %v678 = vadd.f32 %v649, %v653
  %v679 = vadd.f32 %v650, %v653
  %v680 = vmax.f32 %v655, 0.0
  %v681 = vmax.f32 %v656, 0.0
  %v682 = vmax.f32 %v657, 0.0
  %v683 = vmax.f32 %v658, 0.0
  %v684 = vmax.f32 %v659, 0.0
  %v685 = vmax.f32 %v660, 0.0
  %v686 = vmax.f32 %v661, 0.0
  %v687 = vmax.f32 %v662, 0.0
  %v688 = vmax.f32 %v663, 0.0
  %v689 = vmax.f32 %v664, 0.0
  %v690 = vmax.f32 %v665, 0.0
  %v691 = vmax.f32 %v666, 0.0
  %v692 = vmax.f32 %v667, 0.0
  %v693 = vmax.f32 %v668, 0.0
  %v694 = vmax.f32 %v669, 0.0
  %v695 = vmax.f32 %v670, 0.0
  %v696 = vmax.f32 %v671, 0.0
  %v697 = vmax.f32 %v672, 0.0
  %v698 = vmax.f32 %v673, 0.0
  %v699 = vmax.f32 %v674, 0.0
  %v700 = vmax.f32 %v675, 0.0
  %v701 = vmax.f32 %v676, 0.0
  %v702 = vmax.f32 %v677, 0.0
  %v703 = vmax.f32 %v678, 0.0
  %v704 = vmax.f32 %v679, 0.0
  %v705 = vand.u32 2147483647, %v655
  %v706 = vand.u32 2147483647, %v656
  %v707 = vand.u32 2147483647, %v657
  %v708 = vand.u32 2147483647, %v658
  %v709 = vand.u32 2147483647, %v659
  %v710 = vand.u32 2147483647, %v660
  %v711 = vand.u32 2147483647, %v661
  %v712 = vand.u32 2147483647, %v662
  %v713 = vand.u32 2147483647, %v663
  %v714 = vand.u32 2147483647, %v664
  %v715 = vand.u32 2147483647, %v665
  %v716 = vand.u32 2147483647, %v666
  %v717 = vand.u32 2147483647, %v667
  %v718 = vand.u32 2147483647, %v668
  %v719 = vand.u32 2147483647, %v669
  %v720 = vand.u32 2147483647, %v670
  %v721 = vand.u32 2147483647, %v671
  %v722 = vand.u32 2147483647, %v672
  %v723 = vand.u32 2147483647, %v673
  %v724 = vand.u32 2147483647, %v674
  %v725 = vand.u32 2147483647, %v675
  %v726 = vand.u32 2147483647, %v676
  %v727 = vand.u32 2147483647, %v677
  %v728 = vand.u32 2147483647, %v678
  %v729 = vand.u32 2147483647, %v679
  %v730 = vsub.f32 0.0, %v705
  %v731 = vsub.f32 0.0, %v706
  %v732 = vsub.f32 0.0, %v707
  %v733 = vsub.f32 0.0, %v708
  %v734 = vsub.f32 0.0, %v709
  %v735 = vsub.f32 0.0, %v710
  %v736 = vsub.f32 0.0, %v711
  %v737 = vsub.f32 0.0, %v712
  %v738 = vsub.f32 0.0, %v713
  %v739 = vsub.f32 0.0, %v714
  %v740 = vsub.f32 0.0, %v715
  %v741 = vsub.f32 0.0, %v716
  %v742 = vsub.f32 0.0, %v717
  %v743 = vsub.f32 0.0, %v718
  %v744 = vsub.f32 0.0, %v719
  %v745 = vsub.f32 0.0, %v720
  %v746 = vsub.f32 0.0, %v721
  %v747 = vsub.f32 0.0, %v722
  %v748 = vsub.f32 0.0, %v723
  %v749 = vsub.f32 0.0, %v724
  %v750 = vsub.f32 0.0, %v725
  %v751 = vsub.f32 0.0, %v726
  %v752 = vsub.f32 0.0, %v727
  %v753 = vsub.f32 0.0, %v728
  %v754 = vsub.f32 0.0, %v729
  %v755 = vmul.f32 %v730, 1.442695
  %v756 = vpow.pop %v755
  %v757 = vmul.f32 %v731, 1.442695
  %v758 = vpow.pop %v757
  %v759 = vmul.f32 %v732, 1.442695
  %v760 = vpow.pop %v759
  %v761 = vmul.f32 %v733, 1.442695
  %v762 = vpow.pop %v761
  %v763 = vmul.f32 %v734, 1.442695
  %v764 = vpow.pop %v763
  %v765 = vmul.f32 %v735, 1.442695
  %v766 = vpow.pop %v765
  %v767 = vmul.f32 %v736, 1.442695
  %v768 = vpow.pop %v767
  %v769 = vmul.f32 %v737, 1.442695
  %v770 = vpow.pop %v769
  %v771 = vmul.f32 %v738, 1.442695
  %v772 = vpow.pop %v771
  %v773 = vmul.f32 %v739, 1.442695
  %v774 = vpow.pop %v773
  %v775 = vmul.f32 %v740, 1.442695
  %v776 = vpow.pop %v775
  %v777 = vmul.f32 %v741, 1.442695
  %v778 = vpow.pop %v777
  %v779 = vmul.f32 %v742, 1.442695
  %v780 = vpow.pop %v779
  %v781 = vmul.f32 %v743, 1.442695
  %v782 = vpow.pop %v781
  %v783 = vmul.f32 %v744, 1.442695
  %v784 = vpow.pop %v783
  %v785 = vmul.f32 %v745, 1.442695
  %v786 = vpow.pop %v785
  %v787 = vmul.f32 %v746, 1.442695
  %v788 = vpow.pop %v787
  %v789 = vmul.f32 %v747, 1.442695
  %v790 = vpow.pop %v789
  %v791 = vmul.f32 %v748, 1.442695
  %v792 = vpow.pop %v791
  %v793 = vmul.f32 %v749, 1.442695
  %v794 = vpow.pop %v793
  %v795 = vmul.f32 %v750, 1.442695
  %v796 = vpow.pop %v795
  %v797 = vmul.f32 %v751, 1.442695
  %v798 = vpow.pop %v797
  %v799 = vmul.f32 %v752, 1.442695
  %v800 = vpow.pop %v799
  %v801 = vmul.f32 %v753, 1.442695
  %v802 = vpow.pop %v801
  %v803 = vmul.f32 %v754, 1.442695
  %v804 = vpow.pop %v803
  %v805 = vadd.f32 %v756, 1.0
  %v806 = vlog2.pop %v805
  %v807 = vmul.f32 %v806, 0.6931472
  %v808 = vmul.f32 -0.5, %v756
  %v809 = vadd.f32 %v808, 1.0
  %v810 = vmul.f32 %v809, %v756
  %v811 = vand.u32 2147483647, %v756
  %vm812 = vcmp.lt.f32.partialorder %v811, 0.0004427343
  %v813 = vsel %vm812, %v810, %v807
  %v814 = vadd.f32 %v758, 1.0
  %v815 = vlog2.pop %v814
  %v816 = vmul.f32 %v815, 0.6931472
  %v817 = vmul.f32 -0.5, %v758
  %v818 = vadd.f32 %v817, 1.0
  %v819 = vmul.f32 %v818, %v758
  %v820 = vand.u32 2147483647, %v758
  %vm821 = vcmp.lt.f32.partialorder %v820, 0.0004427343
  %v822 = vsel %vm821, %v819, %v816
  %v823 = vadd.f32 %v760, 1.0
  %v824 = vlog2.pop %v823
  %v825 = vmul.f32 %v824, 0.6931472
  %v826 = vmul.f32 -0.5, %v760
  %v827 = vadd.f32 %v826, 1.0
  %v828 = vmul.f32 %v827, %v760
  %v829 = vand.u32 2147483647, %v760
  %vm830 = vcmp.lt.f32.partialorder %v829, 0.0004427343
  %v831 = vsel %vm830, %v828, %v825
  %v832 = vadd.f32 %v762, 1.0
  %v833 = vlog2.pop %v832
  %v834 = vmul.f32 %v833, 0.6931472
  %v835 = vmul.f32 -0.5, %v762
  %v836 = vadd.f32 %v835, 1.0
  %v837 = vmul.f32 %v836, %v762
  %v838 = vand.u32 2147483647, %v762
  %vm839 = vcmp.lt.f32.partialorder %v838, 0.0004427343
  %v840 = vsel %vm839, %v837, %v834
  %v841 = vadd.f32 %v764, 1.0
  %v842 = vlog2.pop %v841
  %v843 = vmul.f32 %v842, 0.6931472
  %v844 = vmul.f32 -0.5, %v764
  %v845 = vadd.f32 %v844, 1.0
  %v846 = vmul.f32 %v845, %v764
  %v847 = vand.u32 2147483647, %v764
  %vm848 = vcmp.lt.f32.partialorder %v847, 0.0004427343
  %v849 = vsel %vm848, %v846, %v843
  %v850 = vadd.f32 %v766, 1.0
  %v851 = vlog2.pop %v850
  %v852 = vmul.f32 %v851, 0.6931472
  %v853 = vmul.f32 -0.5, %v766
  %v854 = vadd.f32 %v853, 1.0
  %v855 = vmul.f32 %v854, %v766
  %v856 = vand.u32 2147483647, %v766
  %vm857 = vcmp.lt.f32.partialorder %v856, 0.0004427343
  %v858 = vsel %vm857, %v855, %v852
  %v859 = vadd.f32 %v768, 1.0
  %v860 = vlog2.pop %v859
  %v861 = vmul.f32 %v860, 0.6931472
  %v862 = vmul.f32 -0.5, %v768
  %v863 = vadd.f32 %v862, 1.0
  %v864 = vmul.f32 %v863, %v768
  %v865 = vand.u32 2147483647, %v768
  %vm866 = vcmp.lt.f32.partialorder %v865, 0.0004427343
  %v867 = vsel %vm866, %v864, %v861
  %v868 = vadd.f32 %v770, 1.0
  %v869 = vlog2.pop %v868
  %v870 = vmul.f32 %v869, 0.6931472
  %v871 = vmul.f32 -0.5, %v770
  %v872 = vadd.f32 %v871, 1.0
  %v873 = vmul.f32 %v872, %v770
  %v874 = vand.u32 2147483647, %v770
  %vm875 = vcmp.lt.f32.partialorder %v874, 0.0004427343
  %v876 = vsel %vm875, %v873, %v870
  %v877 = vadd.f32 %v772, 1.0
  %v878 = vlog2.pop %v877
  %v879 = vmul.f32 %v878, 0.6931472
  %v880 = vmul.f32 -0.5, %v772
  %v881 = vadd.f32 %v880, 1.0
  %v882 = vmul.f32 %v881, %v772
  %v883 = vand.u32 2147483647, %v772
  %vm884 = vcmp.lt.f32.partialorder %v883, 0.0004427343
  %v885 = vsel %vm884, %v882, %v879
  %v886 = vadd.f32 %v774, 1.0
  %v887 = vlog2.pop %v886
  %v888 = vmul.f32 %v887, 0.6931472
  %v889 = vmul.f32 -0.5, %v774
  %v890 = vadd.f32 %v889, 1.0
  %v891 = vmul.f32 %v890, %v774
  %v892 = vand.u32 2147483647, %v774
  %vm893 = vcmp.lt.f32.partialorder %v892, 0.0004427343
  %v894 = vsel %vm893, %v891, %v888
  %v895 = vadd.f32 %v776, 1.0
  %v896 = vlog2.pop %v895
  %v897 = vmul.f32 %v896, 0.6931472
  %v898 = vmul.f32 -0.5, %v776
  %v899 = vadd.f32 %v898, 1.0
  %v900 = vmul.f32 %v899, %v776
  %v901 = vand.u32 2147483647, %v776
  %vm902 = vcmp.lt.f32.partialorder %v901, 0.0004427343
  %v903 = vsel %vm902, %v900, %v897
  %v904 = vadd.f32 %v778, 1.0
  %v905 = vlog2.pop %v904
  %v906 = vmul.f32 %v905, 0.6931472
  %v907 = vmul.f32 -0.5, %v778
  %v908 = vadd.f32 %v907, 1.0
  %v909 = vmul.f32 %v908, %v778
  %v910 = vand.u32 2147483647, %v778
  %vm911 = vcmp.lt.f32.partialorder %v910, 0.0004427343
  %v912 = vsel %vm911, %v909, %v906
  %v913 = vadd.f32 %v780, 1.0
  %v914 = vlog2.pop %v913
  %v915 = vmul.f32 %v914, 0.6931472
  %v916 = vmul.f32 -0.5, %v780
  %v917 = vadd.f32 %v916, 1.0
  %v918 = vmul.f32 %v917, %v780
  %v919 = vand.u32 2147483647, %v780
  %vm920 = vcmp.lt.f32.partialorder %v919, 0.0004427343
  %v921 = vsel %vm920, %v918, %v915
  %v922 = vadd.f32 %v782, 1.0
  %v923 = vlog2.pop %v922
  %v924 = vmul.f32 %v923, 0.6931472
  %v925 = vmul.f32 -0.5, %v782
  %v926 = vadd.f32 %v925, 1.0
  %v927 = vmul.f32 %v926, %v782
  %v928 = vand.u32 2147483647, %v782
  %vm929 = vcmp.lt.f32.partialorder %v928, 0.0004427343
  %v930 = vsel %vm929, %v927, %v924
  %v931 = vadd.f32 %v784, 1.0
  %v932 = vlog2.pop %v931
  %v933 = vmul.f32 %v932, 0.6931472
  %v934 = vmul.f32 -0.5, %v784
  %v935 = vadd.f32 %v934, 1.0
  %v936 = vmul.f32 %v935, %v784
  %v937 = vand.u32 2147483647, %v784
  %vm938 = vcmp.lt.f32.partialorder %v937, 0.0004427343
  %v939 = vsel %vm938, %v936, %v933
  %v940 = vadd.f32 %v786, 1.0
  %v941 = vlog2.pop %v940
  %v942 = vmul.f32 %v941, 0.6931472
  %v943 = vmul.f32 -0.5, %v786
  %v944 = vadd.f32 %v943, 1.0
  %v945 = vmul.f32 %v944, %v786
  %v946 = vand.u32 2147483647, %v786
  %vm947 = vcmp.lt.f32.partialorder %v946, 0.0004427343
  %v948 = vsel %vm947, %v945, %v942
  %v949 = vadd.f32 %v788, 1.0
  %v950 = vlog2.pop %v949
  %v951 = vmul.f32 %v950, 0.6931472
  %v952 = vmul.f32 -0.5, %v788
  %v953 = vadd.f32 %v952, 1.0
  %v954 = vmul.f32 %v953, %v788
  %v955 = vand.u32 2147483647, %v788
  %vm956 = vcmp.lt.f32.partialorder %v955, 0.0004427343
  %v957 = vsel %vm956, %v954, %v951
  %v958 = vadd.f32 %v790, 1.0
  %v959 = vlog2.pop %v958
  %v960 = vmul.f32 %v959, 0.6931472
  %v961 = vmul.f32 -0.5, %v790
  %v962 = vadd.f32 %v961, 1.0
  %v963 = vmul.f32 %v962, %v790
  %v964 = vand.u32 2147483647, %v790
  %vm965 = vcmp.lt.f32.partialorder %v964, 0.0004427343
  %v966 = vsel %vm965, %v963, %v960
  %v967 = vadd.f32 %v792, 1.0
  %v968 = vlog2.pop %v967
  %v969 = vmul.f32 %v968, 0.6931472
  %v970 = vmul.f32 -0.5, %v792
  %v971 = vadd.f32 %v970, 1.0
  %v972 = vmul.f32 %v971, %v792
  %v973 = vand.u32 2147483647, %v792
  %vm974 = vcmp.lt.f32.partialorder %v973, 0.0004427343
  %v975 = vsel %vm974, %v972, %v969
  %v976 = vadd.f32 %v794, 1.0
  %v977 = vlog2.pop %v976
  %v978 = vmul.f32 %v977, 0.6931472
  %v979 = vmul.f32 -0.5, %v794
  %v980 = vadd.f32 %v979, 1.0
  %v981 = vmul.f32 %v980, %v794
  %v982 = vand.u32 2147483647, %v794
  %vm983 = vcmp.lt.f32.partialorder %v982, 0.0004427343
  %v984 = vsel %vm983, %v981, %v978
  %v985 = vadd.f32 %v796, 1.0
  %v986 = vlog2.pop %v985
  %v987 = vmul.f32 %v986, 0.6931472
  %v988 = vmul.f32 -0.5, %v796
  %v989 = vadd.f32 %v988, 1.0
  %v990 = vmul.f32 %v989, %v796
  %v991 = vand.u32 2147483647, %v796
  %vm992 = vcmp.lt.f32.partialorder %v991, 0.0004427343
  %v993 = vsel %vm992, %v990, %v987
  %v994 = vadd.f32 %v798, 1.0
  %v995 = vlog2.pop %v994
  %v996 = vmul.f32 %v995, 0.6931472
  %v997 = vmul.f32 -0.5, %v798
  %v998 = vadd.f32 %v997, 1.0
  %v999 = vmul.f32 %v998, %v798
  %v1000 = vand.u32 2147483647, %v798
  %vm1001 = vcmp.lt.f32.partialorder %v1000, 0.0004427343
  %v1002 = vsel %vm1001, %v999, %v996
  %v1003 = vadd.f32 %v800, 1.0
  %v1004 = vlog2.pop %v1003
  %v1005 = vmul.f32 %v1004, 0.6931472
  %v1006 = vmul.f32 -0.5, %v800
  %v1007 = vadd.f32 %v1006, 1.0
  %v1008 = vmul.f32 %v1007, %v800
  %v1009 = vand.u32 2147483647, %v800
  %vm1010 = vcmp.lt.f32.partialorder %v1009, 0.0004427343
  %v1011 = vsel %vm1010, %v1008, %v1005
  %v1012 = vadd.f32 %v802, 1.0
  %v1013 = vlog2.pop %v1012
  %v1014 = vmul.f32 %v1013, 0.6931472
  %v1015 = vmul.f32 -0.5, %v802
  %v1016 = vadd.f32 %v1015, 1.0
  %v1017 = vmul.f32 %v1016, %v802
  %v1018 = vand.u32 2147483647, %v802
  %vm1019 = vcmp.lt.f32.partialorder %v1018, 0.0004427343
  %v1020 = vsel %vm1019, %v1017, %v1014
  %v1021 = vadd.f32 %v804, 1.0
  %v1022 = vlog2.pop %v1021
  %v1023 = vmul.f32 %v1022, 0.6931472
  %v1024 = vmul.f32 -0.5, %v804
  %v1025 = vadd.f32 %v1024, 1.0
  %v1026 = vmul.f32 %v1025, %v804
  %v1027 = vand.u32 2147483647, %v804
  %vm1028 = vcmp.lt.f32.partialorder %v1027, 0.0004427343
  %v1029 = vsel %vm1028, %v1026, %v1023
  %v1030 = vadd.f32 %v680, %v813
  %v1031 = vadd.f32 %v681, %v822
  %v1032 = vadd.f32 %v682, %v831
  %v1033 = vadd.f32 %v683, %v840
  %v1034 = vadd.f32 %v684, %v849
  %v1035 = vadd.f32 %v685, %v858
  %v1036 = vadd.f32 %v686, %v867
  %v1037 = vadd.f32 %v687, %v876
  %v1038 = vadd.f32 %v688, %v885
  %v1039 = vadd.f32 %v689, %v894
  %v1040 = vadd.f32 %v690, %v903
  %v1041 = vadd.f32 %v691, %v912
  %v1042 = vadd.f32 %v692, %v921
  %v1043 = vadd.f32 %v693, %v930
  %v1044 = vadd.f32 %v694, %v939
  %v1045 = vadd.f32 %v695, %v948
  %v1046 = vadd.f32 %v696, %v957
  %v1047 = vadd.f32 %v697, %v966
  %v1048 = vadd.f32 %v698, %v975
  %v1049 = vadd.f32 %v699, %v984
  %v1050 = vadd.f32 %v700, %v993
  %v1051 = vadd.f32 %v701, %v1002
  %v1052 = vadd.f32 %v702, %v1011
  %v1053 = vadd.f32 %v703, %v1020
  %v1054 = vadd.f32 %v704, %v1029
  %v1055 = vld [vmem:[%s7] sm:$0xff]
  %v1056 = vld [vmem:[%s7 + $0x8] sm:$0xff]
  %v1057 = vld [vmem:[%s7 + $0x10] sm:$0xff]
  %v1058 = vld [vmem:[%s7 + $0x18] sm:$0xff]
  %v1059 = vld [vmem:[%s8] sm:$0x1]
  %v1061 = vperm.slane %v1059, 0
  %vm1063 = vcmask 261120
  %v1065 = vsel %vm1063, %v1030, 0
  %v1068 = vsel %vm1063, %v1031, 0
  %v1071 = vsel %vm1063, %v1032, 0
  %v1074 = vsel %vm1063, %v1033, 0
  %v1077 = vsel %vm1063, %v1034, 0
  %v1080 = vsel %vm1063, %v1035, 0
  %v1083 = vsel %vm1063, %v1036, 0
  %v1086 = vsel %vm1063, %v1037, 0
  %v1089 = vsel %vm1063, %v1038, 0
  %v1092 = vsel %vm1063, %v1039, 0
  %v1095 = vsel %vm1063, %v1040, 0
  %v1098 = vsel %vm1063, %v1041, 0
  %v1101 = vsel %vm1063, %v1042, 0
  %v1104 = vsel %vm1063, %v1043, 0
  %v1107 = vsel %vm1063, %v1044, 0
  %v1110 = vsel %vm1063, %v1045, 0
  %v1113 = vsel %vm1063, %v1046, 0
  %v1116 = vsel %vm1063, %v1047, 0
  %v1119 = vsel %vm1063, %v1048, 0
  %v1122 = vsel %vm1063, %v1049, 0
  %v1125 = vsel %vm1063, %v1050, 0
  %v1128 = vsel %vm1063, %v1051, 0
  %v1131 = vsel %vm1063, %v1052, 0
  %v1134 = vsel %vm1063, %v1053, 0
  %v1137 = vsel %vm1063, %v1054, 0
  %1139 = vmatpush.msra.mxu0 0.0
  %1140 = vmatpush.msra.mxu0 0.0
  %1141 = vmatpush.msra.mxu0 0.0
  %1142 = vmatpush.msra.mxu0 0.0
  %1143 = vmatpush.msra.mxu0 0.0
  %1144 = vmatpush.msra.mxu0 0.0
  %1145 = vmatpush.msra.mxu0 0.0
  %1146 = vmatpush.msra.mxu0 0.0
  %1147 = vmatpush.msra.mxu0 0.0
  %1148 = vmatpush.msra.mxu0 0.0
  %1149 = vmatpush.msra.mxu0 0.0
  %1150 = vmatpush.msra.mxu0 0.0
  %1151 = vmatpush.msra.mxu0 %v1058
  %1152 = vmatpush.msra.mxu0 %v1057
  %1153 = vmatpush.msra.mxu0 %v1056
  %1154 = vmatpush.msra.mxu0 %v1055
  %1155 = vmatmul.f32.gmra.mxu0 %v1065
  %v1156 = vpop.f32.mrf.mxu0
  %v1157 = vadd.f32 %v1061, %v1156
  %1158 = vmatmul.f32.gmra.mxu0 %v1068
  %v1159 = vpop.f32.mrf.mxu0
  %v1160 = vadd.f32 %v1061, %v1159
  %1161 = vmatmul.f32.gmra.mxu0 %v1071
  %v1162 = vpop.f32.mrf.mxu0
  %v1163 = vadd.f32 %v1061, %v1162
  %1164 = vmatmul.f32.gmra.mxu0 %v1074
  %v1165 = vpop.f32.mrf.mxu0
  %v1166 = vadd.f32 %v1061, %v1165
  %1167 = vmatmul.f32.gmra.mxu0 %v1077
  %v1168 = vpop.f32.mrf.mxu0
  %v1169 = vadd.f32 %v1061, %v1168
  %1170 = vmatmul.f32.gmra.mxu0 %v1080
  %v1171 = vpop.f32.mrf.mxu0
  %v1172 = vadd.f32 %v1061, %v1171
  %1173 = vmatmul.f32.gmra.mxu0 %v1083
  %v1174 = vpop.f32.mrf.mxu0
  %v1175 = vadd.f32 %v1061, %v1174
  %1176 = vmatmul.f32.gmra.mxu0 %v1086
  %v1177 = vpop.f32.mrf.mxu0
  %v1178 = vadd.f32 %v1061, %v1177
  %1179 = vmatmul.f32.gmra.mxu0 %v1089
  %v1180 = vpop.f32.mrf.mxu0
  %v1181 = vadd.f32 %v1061, %v1180
  %1182 = vmatmul.f32.gmra.mxu0 %v1092
  %v1183 = vpop.f32.mrf.mxu0
  %v1184 = vadd.f32 %v1061, %v1183
  %1185 = vmatmul.f32.gmra.mxu0 %v1095
  %v1186 = vpop.f32.mrf.mxu0
  %v1187 = vadd.f32 %v1061, %v1186
  %1188 = vmatmul.f32.gmra.mxu0 %v1098
  %v1189 = vpop.f32.mrf.mxu0
  %v1190 = vadd.f32 %v1061, %v1189
  %1191 = vmatmul.f32.gmra.mxu0 %v1101
  %v1192 = vpop.f32.mrf.mxu0
  %v1193 = vadd.f32 %v1061, %v1192
  %1194 = vmatmul.f32.gmra.mxu0 %v1104
  %v1195 = vpop.f32.mrf.mxu0
  %v1196 = vadd.f32 %v1061, %v1195
  %1197 = vmatmul.f32.gmra.mxu0 %v1107
  %v1198 = vpop.f32.mrf.mxu0
  %v1199 = vadd.f32 %v1061, %v1198
  %1200 = vmatmul.f32.gmra.mxu0 %v1110
  %v1201 = vpop.f32.mrf.mxu0
  %v1202 = vadd.f32 %v1061, %v1201
  %1203 = vmatmul.f32.gmra.mxu0 %v1113
  %v1204 = vpop.f32.mrf.mxu0
  %v1205 = vadd.f32 %v1061, %v1204
  %1206 = vmatmul.f32.gmra.mxu0 %v1116
  %v1207 = vpop.f32.mrf.mxu0
  %v1208 = vadd.f32 %v1061, %v1207
  %1209 = vmatmul.f32.gmra.mxu0 %v1119
  %v1210 = vpop.f32.mrf.mxu0
  %v1211 = vadd.f32 %v1061, %v1210
  %1212 = vmatmul.f32.gmra.mxu0 %v1122
  %v1213 = vpop.f32.mrf.mxu0
  %v1214 = vadd.f32 %v1061, %v1213
  %1215 = vmatmul.f32.gmra.mxu0 %v1125
  %v1216 = vpop.f32.mrf.mxu0
  %v1217 = vadd.f32 %v1061, %v1216
  %1218 = vmatmul.f32.gmra.mxu0 %v1128
  %v1219 = vpop.f32.mrf.mxu0
  %v1220 = vadd.f32 %v1061, %v1219
  %1221 = vmatmul.f32.gmra.mxu0 %v1131
  %v1222 = vpop.f32.mrf.mxu0
  %v1223 = vadd.f32 %v1061, %v1222
  %1224 = vmatmul.f32.gmra.mxu0 %v1134
  %v1225 = vpop.f32.mrf.mxu0
  %v1226 = vadd.f32 %v1061, %v1225
  %1227 = vmatmul.f32.gmra.mxu0 %v1137
  %v1228 = vpop.f32.mrf.mxu0
  %v1229 = vadd.f32 %v1061, %v1228
  %1230 = vdwg.mxu0
  %v1231 = vmax.f32 %v1157, 0.0
  %v1232 = vmax.f32 %v1160, 0.0
  %v1233 = vmax.f32 %v1163, 0.0
  %v1234 = vmax.f32 %v1166, 0.0
  %v1235 = vmax.f32 %v1169, 0.0
  %v1236 = vmax.f32 %v1172, 0.0
  %v1237 = vmax.f32 %v1175, 0.0
  %v1238 = vmax.f32 %v1178, 0.0
  %v1239 = vmax.f32 %v1181, 0.0
  %v1240 = vmax.f32 %v1184, 0.0
  %v1241 = vmax.f32 %v1187, 0.0
  %v1242 = vmax.f32 %v1190, 0.0
  %v1243 = vmax.f32 %v1193, 0.0
  %v1244 = vmax.f32 %v1196, 0.0
  %v1245 = vmax.f32 %v1199, 0.0
  %v1246 = vmax.f32 %v1202, 0.0
  %v1247 = vmax.f32 %v1205, 0.0
  %v1248 = vmax.f32 %v1208, 0.0
  %v1249 = vmax.f32 %v1211, 0.0
  %v1250 = vmax.f32 %v1214, 0.0
  %v1251 = vmax.f32 %v1217, 0.0
  %v1252 = vmax.f32 %v1220, 0.0
  %v1253 = vmax.f32 %v1223, 0.0
  %v1254 = vmax.f32 %v1226, 0.0
  %v1255 = vmax.f32 %v1229, 0.0
  %v1256 = vand.u32 2147483647, %v1157
  %v1257 = vand.u32 2147483647, %v1160
  %v1258 = vand.u32 2147483647, %v1163
  %v1259 = vand.u32 2147483647, %v1166
  %v1260 = vand.u32 2147483647, %v1169
  %v1261 = vand.u32 2147483647, %v1172
  %v1262 = vand.u32 2147483647, %v1175
  %v1263 = vand.u32 2147483647, %v1178
  %v1264 = vand.u32 2147483647, %v1181
  %v1265 = vand.u32 2147483647, %v1184
  %v1266 = vand.u32 2147483647, %v1187
  %v1267 = vand.u32 2147483647, %v1190
  %v1268 = vand.u32 2147483647, %v1193
  %v1269 = vand.u32 2147483647, %v1196
  %v1270 = vand.u32 2147483647, %v1199
  %v1271 = vand.u32 2147483647, %v1202
  %v1272 = vand.u32 2147483647, %v1205
  %v1273 = vand.u32 2147483647, %v1208
  %v1274 = vand.u32 2147483647, %v1211
  %v1275 = vand.u32 2147483647, %v1214
  %v1276 = vand.u32 2147483647, %v1217
  %v1277 = vand.u32 2147483647, %v1220
  %v1278 = vand.u32 2147483647, %v1223
  %v1279 = vand.u32 2147483647, %v1226
  %v1280 = vand.u32 2147483647, %v1229
  %v1281 = vsub.f32 0.0, %v1256
  %v1282 = vsub.f32 0.0, %v1257
  %v1283 = vsub.f32 0.0, %v1258
  %v1284 = vsub.f32 0.0, %v1259
  %v1285 = vsub.f32 0.0, %v1260
  %v1286 = vsub.f32 0.0, %v1261
  %v1287 = vsub.f32 0.0, %v1262
  %v1288 = vsub.f32 0.0, %v1263
  %v1289 = vsub.f32 0.0, %v1264
  %v1290 = vsub.f32 0.0, %v1265
  %v1291 = vsub.f32 0.0, %v1266
  %v1292 = vsub.f32 0.0, %v1267
  %v1293 = vsub.f32 0.0, %v1268
  %v1294 = vsub.f32 0.0, %v1269
  %v1295 = vsub.f32 0.0, %v1270
  %v1296 = vsub.f32 0.0, %v1271
  %v1297 = vsub.f32 0.0, %v1272
  %v1298 = vsub.f32 0.0, %v1273
  %v1299 = vsub.f32 0.0, %v1274
  %v1300 = vsub.f32 0.0, %v1275
  %v1301 = vsub.f32 0.0, %v1276
  %v1302 = vsub.f32 0.0, %v1277
  %v1303 = vsub.f32 0.0, %v1278
  %v1304 = vsub.f32 0.0, %v1279
  %v1305 = vsub.f32 0.0, %v1280
  %v1306 = vmul.f32 %v1281, 1.442695
  %v1307 = vpow.pop %v1306
  %v1308 = vmul.f32 %v1282, 1.442695
  %v1309 = vpow.pop %v1308
  %v1310 = vmul.f32 %v1283, 1.442695
  %v1311 = vpow.pop %v1310
  %v1312 = vmul.f32 %v1284, 1.442695
  %v1313 = vpow.pop %v1312
  %v1314 = vmul.f32 %v1285, 1.442695
  %v1315 = vpow.pop %v1314
  %v1316 = vmul.f32 %v1286, 1.442695
  %v1317 = vpow.pop %v1316
  %v1318 = vmul.f32 %v1287, 1.442695
  %v1319 = vpow.pop %v1318
  %v1320 = vmul.f32 %v1288, 1.442695
  %v1321 = vpow.pop %v1320
  %v1322 = vmul.f32 %v1289, 1.442695
  %v1323 = vpow.pop %v1322
  %v1324 = vmul.f32 %v1290, 1.442695
  %v1325 = vpow.pop %v1324
  %v1326 = vmul.f32 %v1291, 1.442695
  %v1327 = vpow.pop %v1326
  %v1328 = vmul.f32 %v1292, 1.442695
  %v1329 = vpow.pop %v1328
  %v1330 = vmul.f32 %v1293, 1.442695
  %v1331 = vpow.pop %v1330
  %v1332 = vmul.f32 %v1294, 1.442695
  %v1333 = vpow.pop %v1332
  %v1334 = vmul.f32 %v1295, 1.442695
  %v1335 = vpow.pop %v1334
  %v1336 = vmul.f32 %v1296, 1.442695
  %v1337 = vpow.pop %v1336
  %v1338 = vmul.f32 %v1297, 1.442695
  %v1339 = vpow.pop %v1338
  %v1340 = vmul.f32 %v1298, 1.442695
  %v1341 = vpow.pop %v1340
  %v1342 = vmul.f32 %v1299, 1.442695
  %v1343 = vpow.pop %v1342
  %v1344 = vmul.f32 %v1300, 1.442695
  %v1345 = vpow.pop %v1344
  %v1346 = vmul.f32 %v1301, 1.442695
  %v1347 = vpow.pop %v1346
  %v1348 = vmul.f32 %v1302, 1.442695
  %v1349 = vpow.pop %v1348
  %v1350 = vmul.f32 %v1303, 1.442695
  %v1351 = vpow.pop %v1350
  %v1352 = vmul.f32 %v1304, 1.442695
  %v1353 = vpow.pop %v1352
  %v1354 = vmul.f32 %v1305, 1.442695
  %v1355 = vpow.pop %v1354
  %v1356 = vadd.f32 %v1307, 1.0
  %v1357 = vlog2.pop %v1356
  %v1358 = vmul.f32 %v1357, 0.6931472
  %v1359 = vmul.f32 -0.5, %v1307
  %v1360 = vadd.f32 %v1359, 1.0
  %v1361 = vmul.f32 %v1360, %v1307
  %v1362 = vand.u32 2147483647, %v1307
  %vm1363 = vcmp.lt.f32.partialorder %v1362, 0.0004427343
  %v1364 = vsel %vm1363, %v1361, %v1358
  %v1365 = vadd.f32 %v1309, 1.0
  %v1366 = vlog2.pop %v1365
  %v1367 = vmul.f32 %v1366, 0.6931472
  %v1368 = vmul.f32 -0.5, %v1309
  %v1369 = vadd.f32 %v1368, 1.0
  %v1370 = vmul.f32 %v1369, %v1309
  %v1371 = vand.u32 2147483647, %v1309
  %vm1372 = vcmp.lt.f32.partialorder %v1371, 0.0004427343
  %v1373 = vsel %vm1372, %v1370, %v1367
  %v1374 = vadd.f32 %v1311, 1.0
  %v1375 = vlog2.pop %v1374
  %v1376 = vmul.f32 %v1375, 0.6931472
  %v1377 = vmul.f32 -0.5, %v1311
  %v1378 = vadd.f32 %v1377, 1.0
  %v1379 = vmul.f32 %v1378, %v1311
  %v1380 = vand.u32 2147483647, %v1311
  %vm1381 = vcmp.lt.f32.partialorder %v1380, 0.0004427343
  %v1382 = vsel %vm1381, %v1379, %v1376
  %v1383 = vadd.f32 %v1313, 1.0
  %v1384 = vlog2.pop %v1383
  %v1385 = vmul.f32 %v1384, 0.6931472
  %v1386 = vmul.f32 -0.5, %v1313
  %v1387 = vadd.f32 %v1386, 1.0
  %v1388 = vmul.f32 %v1387, %v1313
  %v1389 = vand.u32 2147483647, %v1313
  %vm1390 = vcmp.lt.f32.partialorder %v1389, 0.0004427343
  %v1391 = vsel %vm1390, %v1388, %v1385
  %v1392 = vadd.f32 %v1315, 1.0
  %v1393 = vlog2.pop %v1392
  %v1394 = vmul.f32 %v1393, 0.6931472
  %v1395 = vmul.f32 -0.5, %v1315
  %v1396 = vadd.f32 %v1395, 1.0
  %v1397 = vmul.f32 %v1396, %v1315
  %v1398 = vand.u32 2147483647, %v1315
  %vm1399 = vcmp.lt.f32.partialorder %v1398, 0.0004427343
  %v1400 = vsel %vm1399, %v1397, %v1394
  %v1401 = vadd.f32 %v1317, 1.0
  %v1402 = vlog2.pop %v1401
  %v1403 = vmul.f32 %v1402, 0.6931472
  %v1404 = vmul.f32 -0.5, %v1317
  %v1405 = vadd.f32 %v1404, 1.0
  %v1406 = vmul.f32 %v1405, %v1317
  %v1407 = vand.u32 2147483647, %v1317
  %vm1408 = vcmp.lt.f32.partialorder %v1407, 0.0004427343
  %v1409 = vsel %vm1408, %v1406, %v1403
  %v1410 = vadd.f32 %v1319, 1.0
  %v1411 = vlog2.pop %v1410
  %v1412 = vmul.f32 %v1411, 0.6931472
  %v1413 = vmul.f32 -0.5, %v1319
  %v1414 = vadd.f32 %v1413, 1.0
  %v1415 = vmul.f32 %v1414, %v1319
  %v1416 = vand.u32 2147483647, %v1319
  %vm1417 = vcmp.lt.f32.partialorder %v1416, 0.0004427343
  %v1418 = vsel %vm1417, %v1415, %v1412
  %v1419 = vadd.f32 %v1321, 1.0
  %v1420 = vlog2.pop %v1419
  %v1421 = vmul.f32 %v1420, 0.6931472
  %v1422 = vmul.f32 -0.5, %v1321
  %v1423 = vadd.f32 %v1422, 1.0
  %v1424 = vmul.f32 %v1423, %v1321
  %v1425 = vand.u32 2147483647, %v1321
  %vm1426 = vcmp.lt.f32.partialorder %v1425, 0.0004427343
  %v1427 = vsel %vm1426, %v1424, %v1421
  %v1428 = vadd.f32 %v1323, 1.0
  %v1429 = vlog2.pop %v1428
  %v1430 = vmul.f32 %v1429, 0.6931472
  %v1431 = vmul.f32 -0.5, %v1323
  %v1432 = vadd.f32 %v1431, 1.0
  %v1433 = vmul.f32 %v1432, %v1323
  %v1434 = vand.u32 2147483647, %v1323
  %vm1435 = vcmp.lt.f32.partialorder %v1434, 0.0004427343
  %v1436 = vsel %vm1435, %v1433, %v1430
  %v1437 = vadd.f32 %v1325, 1.0
  %v1438 = vlog2.pop %v1437
  %v1439 = vmul.f32 %v1438, 0.6931472
  %v1440 = vmul.f32 -0.5, %v1325
  %v1441 = vadd.f32 %v1440, 1.0
  %v1442 = vmul.f32 %v1441, %v1325
  %v1443 = vand.u32 2147483647, %v1325
  %vm1444 = vcmp.lt.f32.partialorder %v1443, 0.0004427343
  %v1445 = vsel %vm1444, %v1442, %v1439
  %v1446 = vadd.f32 %v1327, 1.0
  %v1447 = vlog2.pop %v1446
  %v1448 = vmul.f32 %v1447, 0.6931472
  %v1449 = vmul.f32 -0.5, %v1327
  %v1450 = vadd.f32 %v1449, 1.0
  %v1451 = vmul.f32 %v1450, %v1327
  %v1452 = vand.u32 2147483647, %v1327
  %vm1453 = vcmp.lt.f32.partialorder %v1452, 0.0004427343
  %v1454 = vsel %vm1453, %v1451, %v1448
  %v1455 = vadd.f32 %v1329, 1.0
  %v1456 = vlog2.pop %v1455
  %v1457 = vmul.f32 %v1456, 0.6931472
  %v1458 = vmul.f32 -0.5, %v1329
  %v1459 = vadd.f32 %v1458, 1.0
  %v1460 = vmul.f32 %v1459, %v1329
  %v1461 = vand.u32 2147483647, %v1329
  %vm1462 = vcmp.lt.f32.partialorder %v1461, 0.0004427343
  %v1463 = vsel %vm1462, %v1460, %v1457
  %v1464 = vadd.f32 %v1331, 1.0
  %v1465 = vlog2.pop %v1464
  %v1466 = vmul.f32 %v1465, 0.6931472
  %v1467 = vmul.f32 -0.5, %v1331
  %v1468 = vadd.f32 %v1467, 1.0
  %v1469 = vmul.f32 %v1468, %v1331
  %v1470 = vand.u32 2147483647, %v1331
  %vm1471 = vcmp.lt.f32.partialorder %v1470, 0.0004427343
  %v1472 = vsel %vm1471, %v1469, %v1466
  %v1473 = vadd.f32 %v1333, 1.0
  %v1474 = vlog2.pop %v1473
  %v1475 = vmul.f32 %v1474, 0.6931472
  %v1476 = vmul.f32 -0.5, %v1333
  %v1477 = vadd.f32 %v1476, 1.0
  %v1478 = vmul.f32 %v1477, %v1333
  %v1479 = vand.u32 2147483647, %v1333
  %vm1480 = vcmp.lt.f32.partialorder %v1479, 0.0004427343
  %v1481 = vsel %vm1480, %v1478, %v1475
  %v1482 = vadd.f32 %v1335, 1.0
  %v1483 = vlog2.pop %v1482
  %v1484 = vmul.f32 %v1483, 0.6931472
  %v1485 = vmul.f32 -0.5, %v1335
  %v1486 = vadd.f32 %v1485, 1.0
  %v1487 = vmul.f32 %v1486, %v1335
  %v1488 = vand.u32 2147483647, %v1335
  %vm1489 = vcmp.lt.f32.partialorder %v1488, 0.0004427343
  %v1490 = vsel %vm1489, %v1487, %v1484
  %v1491 = vadd.f32 %v1337, 1.0
  %v1492 = vlog2.pop %v1491
  %v1493 = vmul.f32 %v1492, 0.6931472
  %v1494 = vmul.f32 -0.5, %v1337
  %v1495 = vadd.f32 %v1494, 1.0
  %v1496 = vmul.f32 %v1495, %v1337
  %v1497 = vand.u32 2147483647, %v1337
  %vm1498 = vcmp.lt.f32.partialorder %v1497, 0.0004427343
  %v1499 = vsel %vm1498, %v1496, %v1493
  %v1500 = vadd.f32 %v1339, 1.0
  %v1501 = vlog2.pop %v1500
  %v1502 = vmul.f32 %v1501, 0.6931472
  %v1503 = vmul.f32 -0.5, %v1339
  %v1504 = vadd.f32 %v1503, 1.0
  %v1505 = vmul.f32 %v1504, %v1339
  %v1506 = vand.u32 2147483647, %v1339
  %vm1507 = vcmp.lt.f32.partialorder %v1506, 0.0004427343
  %v1508 = vsel %vm1507, %v1505, %v1502
  %v1509 = vadd.f32 %v1341, 1.0
  %v1510 = vlog2.pop %v1509
  %v1511 = vmul.f32 %v1510, 0.6931472
  %v1512 = vmul.f32 -0.5, %v1341
  %v1513 = vadd.f32 %v1512, 1.0
  %v1514 = vmul.f32 %v1513, %v1341
  %v1515 = vand.u32 2147483647, %v1341
  %vm1516 = vcmp.lt.f32.partialorder %v1515, 0.0004427343
  %v1517 = vsel %vm1516, %v1514, %v1511
  %v1518 = vadd.f32 %v1343, 1.0
  %v1519 = vlog2.pop %v1518
  %v1520 = vmul.f32 %v1519, 0.6931472
  %v1521 = vmul.f32 -0.5, %v1343
  %v1522 = vadd.f32 %v1521, 1.0
  %v1523 = vmul.f32 %v1522, %v1343
  %v1524 = vand.u32 2147483647, %v1343
  %vm1525 = vcmp.lt.f32.partialorder %v1524, 0.0004427343
  %v1526 = vsel %vm1525, %v1523, %v1520
  %v1527 = vadd.f32 %v1345, 1.0
  %v1528 = vlog2.pop %v1527
  %v1529 = vmul.f32 %v1528, 0.6931472
  %v1530 = vmul.f32 -0.5, %v1345
  %v1531 = vadd.f32 %v1530, 1.0
  %v1532 = vmul.f32 %v1531, %v1345
  %v1533 = vand.u32 2147483647, %v1345
  %vm1534 = vcmp.lt.f32.partialorder %v1533, 0.0004427343
  %v1535 = vsel %vm1534, %v1532, %v1529
  %v1536 = vadd.f32 %v1347, 1.0
  %v1537 = vlog2.pop %v1536
  %v1538 = vmul.f32 %v1537, 0.6931472
  %v1539 = vmul.f32 -0.5, %v1347
  %v1540 = vadd.f32 %v1539, 1.0
  %v1541 = vmul.f32 %v1540, %v1347
  %v1542 = vand.u32 2147483647, %v1347
  %vm1543 = vcmp.lt.f32.partialorder %v1542, 0.0004427343
  %v1544 = vsel %vm1543, %v1541, %v1538
  %v1545 = vadd.f32 %v1349, 1.0
  %v1546 = vlog2.pop %v1545
  %v1547 = vmul.f32 %v1546, 0.6931472
  %v1548 = vmul.f32 -0.5, %v1349
  %v1549 = vadd.f32 %v1548, 1.0
  %v1550 = vmul.f32 %v1549, %v1349
  %v1551 = vand.u32 2147483647, %v1349
  %vm1552 = vcmp.lt.f32.partialorder %v1551, 0.0004427343
  %v1553 = vsel %vm1552, %v1550, %v1547
  %v1554 = vadd.f32 %v1351, 1.0
  %v1555 = vlog2.pop %v1554
  %v1556 = vmul.f32 %v1555, 0.6931472
  %v1557 = vmul.f32 -0.5, %v1351
  %v1558 = vadd.f32 %v1557, 1.0
  %v1559 = vmul.f32 %v1558, %v1351
  %v1560 = vand.u32 2147483647, %v1351
  %vm1561 = vcmp.lt.f32.partialorder %v1560, 0.0004427343
  %v1562 = vsel %vm1561, %v1559, %v1556
  %v1563 = vadd.f32 %v1353, 1.0
  %v1564 = vlog2.pop %v1563
  %v1565 = vmul.f32 %v1564, 0.6931472
  %v1566 = vmul.f32 -0.5, %v1353
  %v1567 = vadd.f32 %v1566, 1.0
  %v1568 = vmul.f32 %v1567, %v1353
  %v1569 = vand.u32 2147483647, %v1353
  %vm1570 = vcmp.lt.f32.partialorder %v1569, 0.0004427343
  %v1571 = vsel %vm1570, %v1568, %v1565
  %v1572 = vadd.f32 %v1355, 1.0
  %v1573 = vlog2.pop %v1572
  %v1574 = vmul.f32 %v1573, 0.6931472
  %v1575 = vmul.f32 -0.5, %v1355
  %v1576 = vadd.f32 %v1575, 1.0
  %v1577 = vmul.f32 %v1576, %v1355
  %v1578 = vand.u32 2147483647, %v1355
  %vm1579 = vcmp.lt.f32.partialorder %v1578, 0.0004427343
  %v1580 = vsel %vm1579, %v1577, %v1574
  %v1581 = vadd.f32 %v1231, %v1364
  %v1582 = vadd.f32 %v1232, %v1373
  %v1583 = vadd.f32 %v1233, %v1382
  %v1584 = vadd.f32 %v1234, %v1391
  %v1585 = vadd.f32 %v1235, %v1400
  %v1586 = vadd.f32 %v1236, %v1409
  %v1587 = vadd.f32 %v1237, %v1418
  %v1588 = vadd.f32 %v1238, %v1427
  %v1589 = vadd.f32 %v1239, %v1436
  %v1590 = vadd.f32 %v1240, %v1445
  %v1591 = vadd.f32 %v1241, %v1454
  %v1592 = vadd.f32 %v1242, %v1463
  %v1593 = vadd.f32 %v1243, %v1472
  %v1594 = vadd.f32 %v1244, %v1481
  %v1595 = vadd.f32 %v1245, %v1490
  %v1596 = vadd.f32 %v1246, %v1499
  %v1597 = vadd.f32 %v1247, %v1508
  %v1598 = vadd.f32 %v1248, %v1517
  %v1599 = vadd.f32 %v1249, %v1526
  %v1600 = vadd.f32 %v1250, %v1535
  %v1601 = vadd.f32 %v1251, %v1544
  %v1602 = vadd.f32 %v1252, %v1553
  %v1603 = vadd.f32 %v1253, %v1562
  %v1604 = vadd.f32 %v1254, %v1571
  %v1605 = vadd.f32 %v1255, %v1580
  %v1606 = vld [vmem:[%s9] sm:$0xff]
  %v1607 = vld [vmem:[%s9 + $0x8] sm:$0xff]
  %v1608 = vld [vmem:[%s9 + $0x10] sm:$0xff]
  %v1609 = vld [vmem:[%s9 + $0x18] sm:$0xff]
  %v1610 = vld [vmem:[%s10] sm:$0x1]
  %v1612 = vperm.slane %v1610, 0
  %v1615 = vsel %vm1063, %v1581, 0
  %v1618 = vsel %vm1063, %v1582, 0
  %v1621 = vsel %vm1063, %v1583, 0
  %v1624 = vsel %vm1063, %v1584, 0
  %v1627 = vsel %vm1063, %v1585, 0
  %v1630 = vsel %vm1063, %v1586, 0
  %v1633 = vsel %vm1063, %v1587, 0
  %v1636 = vsel %vm1063, %v1588, 0
  %v1639 = vsel %vm1063, %v1589, 0
  %v1642 = vsel %vm1063, %v1590, 0
  %v1645 = vsel %vm1063, %v1591, 0
  %v1648 = vsel %vm1063, %v1592, 0
  %v1651 = vsel %vm1063, %v1593, 0
  %v1654 = vsel %vm1063, %v1594, 0
  %v1657 = vsel %vm1063, %v1595, 0
  %v1660 = vsel %vm1063, %v1596, 0
  %v1663 = vsel %vm1063, %v1597, 0
  %v1666 = vsel %vm1063, %v1598, 0
  %v1669 = vsel %vm1063, %v1599, 0
  %v1672 = vsel %vm1063, %v1600, 0
  %v1675 = vsel %vm1063, %v1601, 0
  %v1678 = vsel %vm1063, %v1602, 0
  %v1681 = vsel %vm1063, %v1603, 0
  %v1684 = vsel %vm1063, %v1604, 0
  %v1687 = vsel %vm1063, %v1605, 0
  %1689 = vmatpush.msra.mxu0 0.0
  %1690 = vmatpush.msra.mxu0 0.0
  %1691 = vmatpush.msra.mxu0 0.0
  %1692 = vmatpush.msra.mxu0 0.0
  %1693 = vmatpush.msra.mxu0 0.0
  %1694 = vmatpush.msra.mxu0 0.0
  %1695 = vmatpush.msra.mxu0 0.0
  %1696 = vmatpush.msra.mxu0 0.0
  %1697 = vmatpush.msra.mxu0 0.0
  %1698 = vmatpush.msra.mxu0 0.0
  %1699 = vmatpush.msra.mxu0 0.0
  %1700 = vmatpush.msra.mxu0 0.0
  %1701 = vmatpush.msra.mxu0 %v1609
  %1702 = vmatpush.msra.mxu0 %v1608
  %1703 = vmatpush.msra.mxu0 %v1607
  %1704 = vmatpush.msra.mxu0 %v1606
  %1705 = vmatmul.f32.gmra.mxu0 %v1615
  %v1706 = vpop.f32.mrf.mxu0
  %v1707 = vadd.f32 %v1612, %v1706
  %1708 = vmatmul.f32.gmra.mxu0 %v1618
  %v1709 = vpop.f32.mrf.mxu0
  %v1710 = vadd.f32 %v1612, %v1709
  %1711 = vmatmul.f32.gmra.mxu0 %v1621
  %v1712 = vpop.f32.mrf.mxu0
  %v1713 = vadd.f32 %v1612, %v1712
  %1714 = vmatmul.f32.gmra.mxu0 %v1624
  %v1715 = vpop.f32.mrf.mxu0
  %v1716 = vadd.f32 %v1612, %v1715
  %1717 = vmatmul.f32.gmra.mxu0 %v1627
  %v1718 = vpop.f32.mrf.mxu0
  %v1719 = vadd.f32 %v1612, %v1718
  %1720 = vmatmul.f32.gmra.mxu0 %v1630
  %v1721 = vpop.f32.mrf.mxu0
  %v1722 = vadd.f32 %v1612, %v1721
  %1723 = vmatmul.f32.gmra.mxu0 %v1633
  %v1724 = vpop.f32.mrf.mxu0
  %v1725 = vadd.f32 %v1612, %v1724
  %1726 = vmatmul.f32.gmra.mxu0 %v1636
  %v1727 = vpop.f32.mrf.mxu0
  %v1728 = vadd.f32 %v1612, %v1727
  %1729 = vmatmul.f32.gmra.mxu0 %v1639
  %v1730 = vpop.f32.mrf.mxu0
  %v1731 = vadd.f32 %v1612, %v1730
  %1732 = vmatmul.f32.gmra.mxu0 %v1642
  %v1733 = vpop.f32.mrf.mxu0
  %v1734 = vadd.f32 %v1612, %v1733
  %1735 = vmatmul.f32.gmra.mxu0 %v1645
  %v1736 = vpop.f32.mrf.mxu0
  %v1737 = vadd.f32 %v1612, %v1736
  %1738 = vmatmul.f32.gmra.mxu0 %v1648
  %v1739 = vpop.f32.mrf.mxu0
  %v1740 = vadd.f32 %v1612, %v1739
  %1741 = vmatmul.f32.gmra.mxu0 %v1651
  %v1742 = vpop.f32.mrf.mxu0
  %v1743 = vadd.f32 %v1612, %v1742
  %1744 = vmatmul.f32.gmra.mxu0 %v1654
  %v1745 = vpop.f32.mrf.mxu0
  %v1746 = vadd.f32 %v1612, %v1745
  %1747 = vmatmul.f32.gmra.mxu0 %v1657
  %v1748 = vpop.f32.mrf.mxu0
  %v1749 = vadd.f32 %v1612, %v1748
  %1750 = vmatmul.f32.gmra.mxu0 %v1660
  %v1751 = vpop.f32.mrf.mxu0
  %v1752 = vadd.f32 %v1612, %v1751
  %1753 = vmatmul.f32.gmra.mxu0 %v1663
  %v1754 = vpop.f32.mrf.mxu0
  %v1755 = vadd.f32 %v1612, %v1754
  %1756 = vmatmul.f32.gmra.mxu0 %v1666
  %v1757 = vpop.f32.mrf.mxu0
  %v1758 = vadd.f32 %v1612, %v1757
  %1759 = vmatmul.f32.gmra.mxu0 %v1669
  %v1760 = vpop.f32.mrf.mxu0
  %v1761 = vadd.f32 %v1612, %v1760
  %1762 = vmatmul.f32.gmra.mxu0 %v1672
  %v1763 = vpop.f32.mrf.mxu0
  %v1764 = vadd.f32 %v1612, %v1763
  %1765 = vmatmul.f32.gmra.mxu0 %v1675
  %v1766 = vpop.f32.mrf.mxu0
  %v1767 = vadd.f32 %v1612, %v1766
  %1768 = vmatmul.f32.gmra.mxu0 %v1678
  %v1769 = vpop.f32.mrf.mxu0
  %v1770 = vadd.f32 %v1612, %v1769
  %1771 = vmatmul.f32.gmra.mxu0 %v1681
  %v1772 = vpop.f32.mrf.mxu0
  %v1773 = vadd.f32 %v1612, %v1772
  %1774 = vmatmul.f32.gmra.mxu0 %v1684
  %v1775 = vpop.f32.mrf.mxu0
  %v1776 = vadd.f32 %v1612, %v1775
  %1777 = vmatmul.f32.gmra.mxu0 %v1687
  %v1778 = vpop.f32.mrf.mxu0
  %v1779 = vadd.f32 %v1612, %v1778
  %1780 = vdwg.mxu0
  %vm1781 = vcmask 130048
  %1782 = vst.msk [vmem:[%s11] sm:$0xff] %vm1781, %v1707
  %1783 = vst.msk [vmem:[%s11 + $0x8] sm:$0xff] %vm1781, %v1710
  %1784 = vst.msk [vmem:[%s11 + $0x10] sm:$0xff] %vm1781, %v1713
  %1785 = vst.msk [vmem:[%s11 + $0x18] sm:$0xff] %vm1781, %v1716
  %1786 = vst.msk [vmem:[%s11 + $0x20] sm:$0xff] %vm1781, %v1719
  %1787 = vst.msk [vmem:[%s11 + $0x28] sm:$0xff] %vm1781, %v1722
  %1788 = vst.msk [vmem:[%s11 + $0x30] sm:$0xff] %vm1781, %v1725
  %1789 = vst.msk [vmem:[%s11 + $0x38] sm:$0xff] %vm1781, %v1728
  %1790 = vst.msk [vmem:[%s11 + $0x40] sm:$0xff] %vm1781, %v1731
  %1791 = vst.msk [vmem:[%s11 + $0x48] sm:$0xff] %vm1781, %v1734
  %1792 = vst.msk [vmem:[%s11 + $0x50] sm:$0xff] %vm1781, %v1737
  %1793 = vst.msk [vmem:[%s11 + $0x58] sm:$0xff] %vm1781, %v1740
  %1794 = vst.msk [vmem:[%s11 + $0x60] sm:$0xff] %vm1781, %v1743
  %1795 = vst.msk [vmem:[%s11 + $0x68] sm:$0xff] %vm1781, %v1746
  %1796 = vst.msk [vmem:[%s11 + $0x70] sm:$0xff] %vm1781, %v1749
  %1797 = vst.msk [vmem:[%s11 + $0x78] sm:$0xff] %vm1781, %v1752
  %1798 = vst.msk [vmem:[%s11 + $0x80] sm:$0xff] %vm1781, %v1755
  %1799 = vst.msk [vmem:[%s11 + $0x88] sm:$0xff] %vm1781, %v1758
  %1800 = vst.msk [vmem:[%s11 + $0x90] sm:$0xff] %vm1781, %v1761
  %1801 = vst.msk [vmem:[%s11 + $0x98] sm:$0xff] %vm1781, %v1764
  %1802 = vst.msk [vmem:[%s11 + $0xa0] sm:$0xff] %vm1781, %v1767
  %1803 = vst.msk [vmem:[%s11 + $0xa8] sm:$0xff] %vm1781, %v1770
  %1804 = vst.msk [vmem:[%s11 + $0xb0] sm:$0xff] %vm1781, %v1773
  %1805 = vst.msk [vmem:[%s11 + $0xb8] sm:$0xff] %vm1781, %v1776
  %1806 = vst.msk [vmem:[%s11 + $0xc0] sm:$0xff] %vm1781, %v1779
  // Predicated region
  $region46: #{tpu_custom_call.1} parent=0 // pred_check
    _
  $region47: #{tpu_custom_call.1} parent=0 // pred_check_branch
    %1808 = sbr.rel (0) target = $region49
  $region48: #{tpu_custom_call.1} parent=0 // pred_region
    _
  $region49: #{tpu_custom_call.1} parent=0 // pred_fallthru
    _
  // Predicated region
  $region50: #{tpu_custom_call.1} parent=0 // pred_check
    _
  $region51: #{tpu_custom_call.1} parent=0 // pred_check_branch
    %1810 = sbr.rel (0) target = $region53
  $region52: #{tpu_custom_call.1} parent=0 // pred_region
    _
  $region53: #{tpu_custom_call.1} parent=0 // pred_fallthru
    _

</llo_original>
